<compile_context>
chip_gen: v5e
topology: v5e:2x2
jax: 0.10.0
libtpu: 0.0.40
codegen_flags: <defaults>
</compile_context>

<pallas_src>
import jax
import jax.numpy as jnp
from jax.experimental import pallas as pl
from jax.experimental.pallas import tpu as pltpu


# --------------------------------------------------------------------------
# Small portability / sizing helpers
# --------------------------------------------------------------------------
def _compiler_params(dimension_semantics, vmem_limit_bytes):
    cls = getattr(pltpu, "CompilerParams", None) or getattr(pltpu, "TPUCompilerParams")
    return cls(dimension_semantics=dimension_semantics,
               vmem_limit_bytes=vmem_limit_bytes)


def _vmem_capacity_bytes():
    # Generation-aware (128 MiB v5e/v6e, 64 MiB v7x); safe fallback if the
    # query is unavailable.
    try:
        return int(pltpu.get_tpu_info().vmem_capacity_bytes)
    except Exception:
        return 64 * 1024 * 1024


def _vmem_limit_bytes(capacity):
    # ~75% of physical per-core VMEM, clamped to a safe range.
    return max(32 * 1024 * 1024, min((capacity * 3) // 4, 100 * 1024 * 1024))


def _clip_row_tile(b):
    # MXU-aligned row tile; pad-and-mask in the kernel replaces divisor search.
    return 128 if b <= 128 else 256


def _caption_row_tile(n, v, itemsize, vmem_capacity):
    # Per-buffer byte budget scaled to the generation's VMEM (~5 MiB on v7x,
    # 8 MiB on v5e/v6e); rows derived from the *input* dtype.
    budget = max(2 * 1024 * 1024, min(8 * 1024 * 1024, vmem_capacity // 12))
    rows = max(8, (budget // (itemsize * v)) // 8 * 8)
    n8 = max(8, ((n + 7) // 8) * 8)
    return int(min(rows, n8))


def _two_value_tile(a, b):
    """(8, 128) f32 tile with `a` at [0, 0], `b` at [0, 1], zeros elsewhere."""
    row = jax.lax.broadcasted_iota(jnp.int32, (8, 128), 0)
    lane = jax.lax.broadcasted_iota(jnp.int32, (8, 128), 1)
    first = row == 0
    return jnp.where(first & (lane == 0), a,
                     jnp.where(first & (lane == 1), b, jnp.float32(0.0)))


# --------------------------------------------------------------------------
# Contrastive (CLIP) loss kernel
# --------------------------------------------------------------------------
def _make_clip_kernel(true_b, tm, bp):
    def clip_loss_kernel(scale_ref, img_ref, txt_ref, out_ref):
        i = pl.program_id(0)
        scale = scale_ref[0, 0]

        # Slice the current row block out of the resident feature matrices
        # (no second, redundant block input / DMA).
        row0 = pl.multiple_of(i * tm, tm)
        img_blk = img_ref[pl.ds(row0, tm), :]          # [tm, D] bf16
        txt_blk = txt_ref[pl.ds(row0, tm), :]          # [tm, D] bf16

        # Flash-style contraction of the shared last dim: no transpose
        # materialized, bf16 operands, f32 accumulation on the MXU.
        contract_last = (((1,), (1,)), ((), ()))
        sim_i = scale * jax.lax.dot_general(img_blk, txt_ref[...], contract_last,
                                            preferred_element_type=jnp.float32)
        sim_t = scale * jax.lax.dot_general(txt_blk, img_ref[...], contract_last,
                                            preferred_element_type=jnp.float32)
        # Positive-pair logit (shared diagonal of both directions), f32.
        diag = scale * jnp.sum(img_blk.astype(jnp.float32) *
                               txt_blk.astype(jnp.float32),
                               axis=1, keepdims=True)                # [tm, 1]

        # Pad-and-mask: padded feature rows/cols must not contribute.
        col_valid = jax.lax.broadcasted_iota(jnp.int32, (tm, bp), 1) < true_b
        row_valid = (jax.lax.broadcasted_iota(jnp.int32, (tm, 1), 0)
                     + i * tm) < true_b
        neg = jnp.float32(-1e30)

        def ce_row_sum(sim):                 # lane-major softmax CE, row-summed
            sim_m = jnp.where(col_valid, sim, neg)
            m = jnp.max(sim_m, axis=1, keepdims=True)
            lse = m + jnp.log(jnp.sum(jnp.exp(sim_m - m), axis=1, keepdims=True))
            return jnp.sum(jnp.where(row_valid, lse - diag, jnp.float32(0.0)))

        out_ref[0] = _two_value_tile(ce_row_sum(sim_i), ce_row_sum(sim_t))

    return clip_loss_kernel


# --------------------------------------------------------------------------
# Caption (token cross-entropy with ignore_index) kernel
# --------------------------------------------------------------------------
def _make_caption_kernel(n_rows, pad_id, tile_n):
    def caption_loss_kernel(logits_ref, labels_ref, out_ref):
        i = pl.program_id(0)
        logits = logits_ref[...]                       # [tile_n, V] native dtype
        labels = labels_ref[...]                       # [tile_n, 1] int32

        # Ragged-last-tile mask (array is NOT padded in HBM); combined with the
        # ignore_index mask via a select so garbage OOB rows cannot leak NaN/inf.
        row_idx = jax.lax.broadcasted_iota(jnp.int32, (tile_n, 1), 0) + i * tile_n
        valid = (labels != pad_id) & (row_idx < n_rows)

        # max / select in native dtype; exp/sum/log in f32.
        m = jnp.max(logits, axis=1, keepdims=True)
        shifted = (logits - m).astype(jnp.float32)
        lse = m.astype(jnp.float32) + jnp.log(
            jnp.sum(jnp.exp(shifted), axis=1, keepdims=True))

        vocab_idx = jax.lax.broadcasted_iota(jnp.int32, logits.shape, 1)
        correct = jnp.sum(jnp.where(vocab_idx == labels, logits,
                                    jnp.zeros_like(logits)),
                          axis=1, keepdims=True).astype(jnp.float32)

        per_tok = jnp.where(valid, lse - correct, jnp.float32(0.0))
        n_valid = jnp.where(valid, jnp.float32(1.0), jnp.float32(0.0))
        out_ref[0] = _two_value_tile(jnp.sum(per_tok), jnp.sum(n_valid))

    return caption_loss_kernel


# --------------------------------------------------------------------------
# Wrapper
# --------------------------------------------------------------------------
def coca_loss(image_features, text_features, logits, labels, logit_scale,
              *, caption_loss_weight, clip_loss_weight, pad_id=0):
    B, D = image_features.shape
    Bc, T, V = logits.shape
    pad_id = int(pad_id)                      # ignore_index is a static hparam
    vmem_cap = _vmem_capacity_bytes()
    vmem_limit = _vmem_limit_bytes(vmem_cap)

    # ---- contrastive loss: grid over MXU-aligned row blocks ----
    tm = _clip_row_tile(B)
    Bp = ((B + tm - 1) // tm) * tm
    grid_b = Bp // tm

    # Feed the MXU in bf16 (f32 accumulation) and halve the resident feature
    # bytes; keep lower-precision inputs as-is.
    compute_dtype = (jnp.bfloat16 if image_features.dtype == jnp.float32
                     else image_features.dtype)
    img_p = image_features.astype(compute_dtype)
    txt_p = text_features.astype(compute_dtype)
    if Bp != B:
        img_p = jnp.pad(img_p, ((0, Bp - B), (0, 0)))   # small [B, D] pad only
        txt_p = jnp.pad(txt_p, ((0, Bp - B), (0, 0)))
    scale_arr = jnp.asarray(logit_scale, jnp.float32).reshape(1, 1)

    clip_kernel = _make_clip_kernel(B, tm, Bp)

    def run_clip(optimized):
        if optimized:
            # scale in SMEM; grid-invariant feature matrices single-buffered.
            mem_space = (getattr(pltpu, "MemorySpace", None)
                         or getattr(pltpu, "TPUMemorySpace"))
            scale_spec = pl.BlockSpec(memory_space=mem_space.SMEM)
            feat_specs = [pl.BlockSpec((Bp, D), lambda i: (0, 0),
                                       pipeline_mode=pl.Buffered(1))
                          for _ in range(2)]
        else:
            scale_spec = pl.BlockSpec((1, 1), lambda i: (0, 0))
            feat_specs = [pl.BlockSpec((Bp, D), lambda i: (0, 0))
                          for _ in range(2)]
        return pl.pallas_call(
            clip_kernel,
            out_shape=jax.ShapeDtypeStruct((grid_b, 8, 128), jnp.float32),
            grid=(grid_b,),
            in_specs=[scale_spec] + feat_specs,
            out_specs=pl.BlockSpec((1, 8, 128), lambda i: (i, 0, 0)),
            compiler_params=_compiler_params(("parallel",), vmem_limit),
        )(scale_arr, img_p, txt_p)

    # Portability fallback: older Pallas builds may lack SMEM-input BlockSpecs
    # or pl.Buffered(1); semantics of the fallback path are identical.
    try:
        clip_partial = run_clip(optimized=True)
    except Exception:
        clip_partial = run_clip(optimized=False)

    loss_i_sum = jnp.sum(clip_partial[:, 0, 0])
    loss_t_sum = jnp.sum(clip_partial[:, 0, 1])
    clip_raw = 0.5 * (loss_i_sum + loss_t_sum) / B

    # ---- caption loss: tiled token CE over flattened, UN-padded [N, V] ----
    N = Bc * T
    logits_flat = logits.reshape(N, V)
    labels_flat = labels.reshape(N, 1).astype(jnp.int32)

    tile_n = _caption_row_tile(N, V, logits.dtype.itemsize, vmem_cap)
    grid_n = (N + tile_n - 1) // tile_n

    caption_partial = pl.pallas_call(
        _make_caption_kernel(N, pad_id, tile_n),
        out_shape=jax.ShapeDtypeStruct((grid_n, 8, 128), jnp.float32),
        grid=(grid_n,),
        in_specs=[pl.BlockSpec((tile_n, V), lambda i: (i, 0)),
                  pl.BlockSpec((tile_n, 1), lambda i: (i, 0))],
        out_specs=pl.BlockSpec((1, 8, 128), lambda i: (i, 0, 0)),
        compiler_params=_compiler_params(("parallel",), vmem_limit),
    )(logits_flat, labels_flat)

    loss_sum = jnp.sum(caption_partial[:, 0, 0])
    valid_sum = jnp.sum(caption_partial[:, 0, 1])
    # NOTE: PyTorch returns NaN when every token is ignore_index; we return 0.
    caption_raw = loss_sum / jnp.maximum(valid_sum, 1.0)

    return clip_loss_weight * clip_raw, caption_loss_weight * caption_raw


# --------------------------------------------------------------------------
# Pure-JAX reference mirroring the PyTorch module (world_size == 1)
# --------------------------------------------------------------------------
def _reference(image_features, text_features, logits, labels, logit_scale,
               caption_loss_weight, clip_loss_weight, pad_id=0):
    sim = logit_scale * image_features @ text_features.T
    B = sim.shape[0]
    lbl = jnp.arange(B)

    def ce(lg, target):
        lse = jax.scipy.special.logsumexp(lg, axis=1)
        picked = jnp.take_along_axis(lg, target[:, None], axis=1)[:, 0]
        return jnp.mean(lse - picked)

    clip = 0.5 * (ce(sim, lbl) + ce(sim.T, lbl)) * clip_loss_weight

    Bc, T, V = logits.shape
    lf = logits.reshape(Bc * T, V)
    yf = labels.reshape(Bc * T)
    lse = jax.scipy.special.logsumexp(lf, axis=1)
    picked = jnp.take_along_axis(lf, yf[:, None], axis=1)[:, 0]
    valid = (yf != pad_id).astype(jnp.float32)
    cap = jnp.sum((lse - picked) * valid) / jnp.maximum(jnp.sum(valid), 1.0)
    return clip, cap * caption_loss_weight


if __name__ == "__main__":
    key = jax.random.PRNGKey(0)
    k1, k2, k3, k4 = jax.random.split(key, 4)

    B, D = 8, 32          # contrastive batch / feature dim
    T, V = 16, 128        # caption sequence length / vocab size
    pad_id = 0
    caption_loss_weight = 2.0
    clip_loss_weight = 1.0

    image_features = jax.random.normal(k1, (B, D), dtype=jnp.float32)
    text_features = jax.random.normal(k2, (B, D), dtype=jnp.float32)
    cap_logits = jax.random.normal(k3, (B, T, V), dtype=jnp.float32)
    cap_labels = jax.random.randint(k4, (B, T), 0, V, dtype=jnp.int32)
    # force some padding positions to exercise ignore_index
    cap_labels = cap_labels.at[:, -3:].set(pad_id)
    logit_scale = jnp.float32(2.6592)  # exp(ln(1/0.07)) style scale

    clip_l, cap_l = coca_loss(
        image_features, text_features, cap_logits, cap_labels, logit_scale,
        caption_loss_weight=caption_loss_weight,
        clip_loss_weight=clip_loss_weight,
        pad_id=pad_id,
    )
    jax.block_until_ready((clip_l, cap_l))

    # The kernel intentionally feeds the MXU in bf16 (with f32 accumulation), so
    # compare the contrastive term against a reference built from the same
    # bf16-quantized features (tight check of the kernel math); the caption term
    # is full f32 and is checked against the exact reference.
    img_q = image_features.astype(jnp.bfloat16).astype(jnp.float32)
    txt_q = text_features.astype(jnp.bfloat16).astype(jnp.float32)
    ref_clip, _ = _reference(img_q, txt_q, cap_logits, cap_labels, logit_scale,
                             caption_loss_weight, clip_loss_weight, pad_id)
    _, ref_cap = _reference(image_features, text_features, cap_logits,
                            cap_labels, logit_scale,
                            caption_loss_weight, clip_loss_weight, pad_id)

    assert jnp.allclose(clip_l, ref_clip, rtol=1e-3, atol=1e-3), (clip_l, ref_clip)
    assert jnp.allclose(cap_l, ref_cap, rtol=1e-3, atol=1e-3), (cap_l, ref_cap)

    print("KERNEL_OK")
</pallas_src>

<mosaic_0001>
module attributes {stable_mosaic.version = 11 : i64} {
  func.func @clip_loss_kernel(%arg0: i32, %arg1: memref<1x1xf32, #tpu.memory_space<smem>>, %arg2: memref<128x32xbf16, #tpu.memory_space<vmem>>, %arg3: memref<128x32xbf16, #tpu.memory_space<vmem>>, %arg4: memref<1x8x128xf32, #tpu.memory_space<vmem>>) attributes {dimension_semantics = [#tpu.dimension_semantics<parallel>], iteration_bounds = array<i64: 1>, scalar_prefetch = 0 : i64, scratch_operands = 0 : i64, tpu.core_type = #tpu.core_type<tc>, window_params = [{transform_indices = @transform_0, window_bounds = array<i64: 1, 1>}, {pipeline_mode = #tpu.pipeline_mode<synchronous>, transform_indices = @transform_1, window_bounds = array<i64: 128, 32>}, {pipeline_mode = #tpu.pipeline_mode<synchronous>, transform_indices = @transform_2, window_bounds = array<i64: 128, 32>}, {transform_indices = @transform_3, window_bounds = array<i64: 1, 8, 128>}]} {
    %c0 = arith.constant 0 : index
    %c0_0 = arith.constant 0 : index
    %0 = memref.load %arg1[%c0, %c0_0] : memref<1x1xf32, #tpu.memory_space<smem>>
    %c128_i32 = arith.constant 128 : i32
    %1 = arith.muli %arg0, %c128_i32 : i32
    %2 = tpu.assume_multiple %1, 128 : i32
    %3 = arith.index_cast %2 : i32 to index
    %c0_1 = arith.constant 0 : index
    %4 = vector.load %arg2[%3, %c0_1] : memref<128x32xbf16, #tpu.memory_space<vmem>>, vector<128x32xbf16>
    %5 = arith.index_cast %2 : i32 to index
    %c0_2 = arith.constant 0 : index
    %6 = vector.load %arg3[%5, %c0_2] : memref<128x32xbf16, #tpu.memory_space<vmem>>, vector<128x32xbf16>
    %c0_3 = arith.constant 0 : index
    %c0_4 = arith.constant 0 : index
    %7 = vector.load %arg3[%c0_3, %c0_4] : memref<128x32xbf16, #tpu.memory_space<vmem>>, vector<128x32xbf16>
    %cst = arith.constant dense<0.000000e+00> : vector<128x128xf32>
    %8 = tpu.matmul %4, %7, %cst {dimension_numbers = #tpu.dot_dimension_numbers<[1], [1], [0], [0], [0, 0, 1, 0], [], []>} : vector<128x32xbf16>, vector<128x32xbf16>, vector<128x128xf32> -> vector<128x128xf32>
    %9 = vector.broadcast %0 : f32 to vector<128x128xf32>
    %10 = arith.mulf %9, %8 : vector<128x128xf32>
    %c0_5 = arith.constant 0 : index
    %c0_6 = arith.constant 0 : index
    %11 = vector.load %arg2[%c0_5, %c0_6] : memref<128x32xbf16, #tpu.memory_space<vmem>>, vector<128x32xbf16>
    %cst_7 = arith.constant dense<0.000000e+00> : vector<128x128xf32>
    %12 = tpu.matmul %6, %11, %cst_7 {dimension_numbers = #tpu.dot_dimension_numbers<[1], [1], [0], [0], [0, 0, 1, 0], [], []>} : vector<128x32xbf16>, vector<128x32xbf16>, vector<128x128xf32> -> vector<128x128xf32>
    %13 = vector.broadcast %0 : f32 to vector<128x128xf32>
    %14 = arith.mulf %13, %12 : vector<128x128xf32>
    %15 = arith.extf %4 : vector<128x32xbf16> to vector<128x32xf32>
    %16 = arith.extf %6 : vector<128x32xbf16> to vector<128x32xf32>
    %17 = arith.mulf %15, %16 : vector<128x32xf32>
    %cst_8 = arith.constant dense<0.000000e+00> : vector<128xf32>
    %18 = vector.multi_reduction <add>, %17, %cst_8 [1] : vector<128x32xf32> to vector<128xf32>
    %19 = vector.shape_cast %18 : vector<128xf32> to vector<128x1xf32>
    %20 = vector.broadcast %0 : f32 to vector<128x1xf32>
    %21 = arith.mulf %20, %19 : vector<128x1xf32>
    %22 = tpu.iota {dimensions = array<i32: 1>} : vector<128x128xi32>
    %c8_i32 = arith.constant 8 : i32
    %23 = vector.broadcast %c8_i32 : i32 to vector<128x128xi32>
    %24 = arith.cmpi slt, %22, %23 : vector<128x128xi32>
    %25 = tpu.iota {dimensions = array<i32: 0>} : vector<128x1xi32>
    %c128_i32_9 = arith.constant 128 : i32
    %26 = arith.muli %arg0, %c128_i32_9 : i32
    %27 = vector.broadcast %26 : i32 to vector<128x1xi32>
    %28 = arith.addi %25, %27 : vector<128x1xi32>
    %c8_i32_10 = arith.constant 8 : i32
    %29 = vector.broadcast %c8_i32_10 : i32 to vector<128x1xi32>
    %30 = arith.cmpi slt, %28, %29 : vector<128x1xi32>
    %cst_11 = arith.constant -1.000000e+30 : f32
    %31 = vector.broadcast %cst_11 : f32 to vector<128x128xf32>
    %32 = arith.select %24, %10, %31 : vector<128x128xi1>, vector<128x128xf32>
    %cst_12 = arith.constant dense<0xFF800000> : vector<128xf32>
    %33 = vector.multi_reduction <maximumf>, %32, %cst_12 [1] : vector<128x128xf32> to vector<128xf32>
    %34 = vector.shape_cast %33 : vector<128xf32> to vector<128x1xf32>
    %35 = vector.broadcast %34 : vector<128x1xf32> to vector<128x128xf32>
    %36 = arith.subf %32, %35 : vector<128x128xf32>
    %37 = math.exp %36 : vector<128x128xf32>
    %cst_13 = arith.constant dense<0.000000e+00> : vector<128xf32>
    %38 = vector.multi_reduction <add>, %37, %cst_13 [1] : vector<128x128xf32> to vector<128xf32>
    %39 = vector.shape_cast %38 : vector<128xf32> to vector<128x1xf32>
    %40 = math.log %39 : vector<128x1xf32>
    %41 = arith.addf %34, %40 : vector<128x1xf32>
    %42 = arith.subf %41, %21 : vector<128x1xf32>
    %cst_14 = arith.constant 0.000000e+00 : f32
    %43 = vector.broadcast %cst_14 : f32 to vector<128x1xf32>
    %44 = arith.select %30, %42, %43 : vector<128x1xi1>, vector<128x1xf32>
    %45 = vector.shape_cast %44 : vector<128x1xf32> to vector<1x128x1xf32>
    %cst_15 = arith.constant dense<0.000000e+00> : vector<1xf32>
    %46 = vector.multi_reduction <add>, %45, %cst_15 [1, 2] : vector<1x128x1xf32> to vector<1xf32>
    %47 = vector.shape_cast %46 : vector<1xf32> to vector<1x1x1xf32>
    %48 = vector.extract %47[0, 0, 0] : f32 from vector<1x1x1xf32>
    %cst_16 = arith.constant -1.000000e+30 : f32
    %49 = vector.broadcast %cst_16 : f32 to vector<128x128xf32>
    %50 = arith.select %24, %14, %49 : vector<128x128xi1>, vector<128x128xf32>
    %cst_17 = arith.constant dense<0xFF800000> : vector<128xf32>
    %51 = vector.multi_reduction <maximumf>, %50, %cst_17 [1] : vector<128x128xf32> to vector<128xf32>
    %52 = vector.shape_cast %51 : vector<128xf32> to vector<128x1xf32>
    %53 = vector.broadcast %52 : vector<128x1xf32> to vector<128x128xf32>
    %54 = arith.subf %50, %53 : vector<128x128xf32>
    %55 = math.exp %54 : vector<128x128xf32>
    %cst_18 = arith.constant dense<0.000000e+00> : vector<128xf32>
    %56 = vector.multi_reduction <add>, %55, %cst_18 [1] : vector<128x128xf32> to vector<128xf32>
    %57 = vector.shape_cast %56 : vector<128xf32> to vector<128x1xf32>
    %58 = math.log %57 : vector<128x1xf32>
    %59 = arith.addf %52, %58 : vector<128x1xf32>
    %60 = arith.subf %59, %21 : vector<128x1xf32>
    %cst_19 = arith.constant 0.000000e+00 : f32
    %61 = vector.broadcast %cst_19 : f32 to vector<128x1xf32>
    %62 = arith.select %30, %60, %61 : vector<128x1xi1>, vector<128x1xf32>
    %63 = vector.shape_cast %62 : vector<128x1xf32> to vector<1x128x1xf32>
    %cst_20 = arith.constant dense<0.000000e+00> : vector<1xf32>
    %64 = vector.multi_reduction <add>, %63, %cst_20 [1, 2] : vector<1x128x1xf32> to vector<1xf32>
    %65 = vector.shape_cast %64 : vector<1xf32> to vector<1x1x1xf32>
    %66 = vector.extract %65[0, 0, 0] : f32 from vector<1x1x1xf32>
    %67 = tpu.iota {dimensions = array<i32: 0>} : vector<8x128xi32>
    %68 = tpu.iota {dimensions = array<i32: 1>} : vector<8x128xi32>
    %c0_i32 = arith.constant 0 : i32
    %69 = vector.broadcast %c0_i32 : i32 to vector<8x128xi32>
    %70 = arith.cmpi eq, %67, %69 : vector<8x128xi32>
    %c0_i32_21 = arith.constant 0 : i32
    %71 = vector.broadcast %c0_i32_21 : i32 to vector<8x128xi32>
    %72 = arith.cmpi eq, %68, %71 : vector<8x128xi32>
    %73 = arith.andi %70, %72 : vector<8x128xi1>
    %c1_i32 = arith.constant 1 : i32
    %74 = vector.broadcast %c1_i32 : i32 to vector<8x128xi32>
    %75 = arith.cmpi eq, %68, %74 : vector<8x128xi32>
    %76 = arith.andi %70, %75 : vector<8x128xi1>
    %cst_22 = arith.constant 0.000000e+00 : f32
    %77 = vector.broadcast %66 : f32 to vector<8x128xf32>
    %78 = vector.broadcast %cst_22 : f32 to vector<8x128xf32>
    %79 = arith.select %76, %77, %78 : vector<8x128xi1>, vector<8x128xf32>
    %80 = vector.broadcast %48 : f32 to vector<8x128xf32>
    %81 = arith.select %73, %80, %79 : vector<8x128xi1>, vector<8x128xf32>
    %c0_23 = arith.constant 0 : index
    %c0_24 = arith.constant 0 : index
    %c0_25 = arith.constant 0 : index
    %82 = vector.load %arg4[%c0_23, %c0_24, %c0_25] : memref<1x8x128xf32, #tpu.memory_space<vmem>>, vector<1x8x128xf32>
    %83 = vector.shape_cast %82 : vector<1x8x128xf32> to vector<8x128xf32>
    %84 = vector.shape_cast %81 : vector<8x128xf32> to vector<1x8x128xf32>
    tpu.vector_store %arg4[%c0_23, %c0_24, %c0_25], %84 {strides = array<i32>} : memref<1x8x128xf32, #tpu.memory_space<vmem>>, vector<1x8x128xf32>,
    return
  }
  func.func @transform_0(%arg0: i32) -> (i32, i32) {
    %c0_i32 = arith.constant 0 : i32
    %c0_i32_0 = arith.constant 0 : i32
    %c0_i32_1 = arith.constant 0 : i32
    return %c0_i32, %c0_i32_0 : i32, i32
  }
  func.func @transform_1(%arg0: i32) -> (i32, i32) {
    %c0_i32 = arith.constant 0 : i32
    %c0_i32_0 = arith.constant 0 : i32
    %c0_i32_1 = arith.constant 0 : i32
    return %c0_i32, %c0_i32_0 : i32, i32
  }
  func.func @transform_2(%arg0: i32) -> (i32, i32) {
    %c0_i32 = arith.constant 0 : i32
    %c0_i32_0 = arith.constant 0 : i32
    %c0_i32_1 = arith.constant 0 : i32
    return %c0_i32, %c0_i32_0 : i32, i32
  }
  func.func @transform_3(%arg0: i32) -> (i32, i32, i32) {
    %c0_i32 = arith.constant 0 : i32
    %c0_i32_0 = arith.constant 0 : i32
    %c0_i32_1 = arith.constant 0 : i32
    return %arg0, %c0_i32, %c0_i32_0 : i32, i32, i32
  }
}

module attributes {stable_mosaic.version = 11 : i64} {
  func.func @clip_loss_kernel(%arg0: i32, %arg1: memref<1x1xf32, #tpu.memory_space<vmem>>, %arg2: memref<128x32xbf16, #tpu.memory_space<vmem>>, %arg3: memref<128x32xbf16, #tpu.memory_space<vmem>>, %arg4: memref<1x8x128xf32, #tpu.memory_space<vmem>>) attributes {dimension_semantics = [#tpu.dimension_semantics<parallel>], iteration_bounds = array<i64: 1>, scalar_prefetch = 0 : i64, scratch_operands = 0 : i64, tpu.core_type = #tpu.core_type<tc>, window_params = [{pipeline_mode = #tpu.pipeline_mode<synchronous>, transform_indices = @transform_0, window_bounds = array<i64: 1, 1>}, {pipeline_mode = #tpu.pipeline_mode<synchronous>, transform_indices = @transform_1, window_bounds = array<i64: 128, 32>}, {pipeline_mode = #tpu.pipeline_mode<synchronous>, transform_indices = @transform_2, window_bounds = array<i64: 128, 32>}, {transform_indices = @transform_3, window_bounds = array<i64: 1, 8, 128>}]} {
    %c0 = arith.constant 0 : index
    %c0_0 = arith.constant 0 : index
    %0 = vector.load %arg1[%c0, %c0_0] : memref<1x1xf32, #tpu.memory_space<vmem>>, vector<1x1xf32>
    %1 = vector.extract %0[0, 0] : f32 from vector<1x1xf32>
    %c128_i32 = arith.constant 128 : i32
    %2 = arith.muli %arg0, %c128_i32 : i32
    %3 = tpu.assume_multiple %2, 128 : i32
    %4 = arith.index_cast %3 : i32 to index
    %c0_1 = arith.constant 0 : index
    %5 = vector.load %arg2[%4, %c0_1] : memref<128x32xbf16, #tpu.memory_space<vmem>>, vector<128x32xbf16>
    %6 = arith.index_cast %3 : i32 to index
    %c0_2 = arith.constant 0 : index
    %7 = vector.load %arg3[%6, %c0_2] : memref<128x32xbf16, #tpu.memory_space<vmem>>, vector<128x32xbf16>
    %c0_3 = arith.constant 0 : index
    %c0_4 = arith.constant 0 : index
    %8 = vector.load %arg3[%c0_3, %c0_4] : memref<128x32xbf16, #tpu.memory_space<vmem>>, vector<128x32xbf16>
    %cst = arith.constant dense<0.000000e+00> : vector<128x128xf32>
    %9 = tpu.matmul %5, %8, %cst {dimension_numbers = #tpu.dot_dimension_numbers<[1], [1], [0], [0], [0, 0, 1, 0], [], []>} : vector<128x32xbf16>, vector<128x32xbf16>, vector<128x128xf32> -> vector<128x128xf32>
    %10 = vector.broadcast %1 : f32 to vector<128x128xf32>
    %11 = arith.mulf %10, %9 : vector<128x128xf32>
    %c0_5 = arith.constant 0 : index
    %c0_6 = arith.constant 0 : index
    %12 = vector.load %arg2[%c0_5, %c0_6] : memref<128x32xbf16, #tpu.memory_space<vmem>>, vector<128x32xbf16>
    %cst_7 = arith.constant dense<0.000000e+00> : vector<128x128xf32>
    %13 = tpu.matmul %7, %12, %cst_7 {dimension_numbers = #tpu.dot_dimension_numbers<[1], [1], [0], [0], [0, 0, 1, 0], [], []>} : vector<128x32xbf16>, vector<128x32xbf16>, vector<128x128xf32> -> vector<128x128xf32>
    %14 = vector.broadcast %1 : f32 to vector<128x128xf32>
    %15 = arith.mulf %14, %13 : vector<128x128xf32>
    %16 = arith.extf %5 : vector<128x32xbf16> to vector<128x32xf32>
    %17 = arith.extf %7 : vector<128x32xbf16> to vector<128x32xf32>
    %18 = arith.mulf %16, %17 : vector<128x32xf32>
    %cst_8 = arith.constant dense<0.000000e+00> : vector<128xf32>
    %19 = vector.multi_reduction <add>, %18, %cst_8 [1] : vector<128x32xf32> to vector<128xf32>
    %20 = vector.shape_cast %19 : vector<128xf32> to vector<128x1xf32>
    %21 = vector.broadcast %1 : f32 to vector<128x1xf32>
    %22 = arith.mulf %21, %20 : vector<128x1xf32>
    %23 = tpu.iota {dimensions = array<i32: 1>} : vector<128x128xi32>
    %c8_i32 = arith.constant 8 : i32
    %24 = vector.broadcast %c8_i32 : i32 to vector<128x128xi32>
    %25 = arith.cmpi slt, %23, %24 : vector<128x128xi32>
    %26 = tpu.iota {dimensions = array<i32: 0>} : vector<128x1xi32>
    %c128_i32_9 = arith.constant 128 : i32
    %27 = arith.muli %arg0, %c128_i32_9 : i32
    %28 = vector.broadcast %27 : i32 to vector<128x1xi32>
    %29 = arith.addi %26, %28 : vector<128x1xi32>
    %c8_i32_10 = arith.constant 8 : i32
    %30 = vector.broadcast %c8_i32_10 : i32 to vector<128x1xi32>
    %31 = arith.cmpi slt, %29, %30 : vector<128x1xi32>
    %cst_11 = arith.constant -1.000000e+30 : f32
    %32 = vector.broadcast %cst_11 : f32 to vector<128x128xf32>
    %33 = arith.select %25, %11, %32 : vector<128x128xi1>, vector<128x128xf32>
    %cst_12 = arith.constant dense<0xFF800000> : vector<128xf32>
    %34 = vector.multi_reduction <maximumf>, %33, %cst_12 [1] : vector<128x128xf32> to vector<128xf32>
    %35 = vector.shape_cast %34 : vector<128xf32> to vector<128x1xf32>
    %36 = vector.broadcast %35 : vector<128x1xf32> to vector<128x128xf32>
    %37 = arith.subf %33, %36 : vector<128x128xf32>
    %38 = math.exp %37 : vector<128x128xf32>
    %cst_13 = arith.constant dense<0.000000e+00> : vector<128xf32>
    %39 = vector.multi_reduction <add>, %38, %cst_13 [1] : vector<128x128xf32> to vector<128xf32>
    %40 = vector.shape_cast %39 : vector<128xf32> to vector<128x1xf32>
    %41 = math.log %40 : vector<128x1xf32>
    %42 = arith.addf %35, %41 : vector<128x1xf32>
    %43 = arith.subf %42, %22 : vector<128x1xf32>
    %cst_14 = arith.constant 0.000000e+00 : f32
    %44 = vector.broadcast %cst_14 : f32 to vector<128x1xf32>
    %45 = arith.select %31, %43, %44 : vector<128x1xi1>, vector<128x1xf32>
    %46 = vector.shape_cast %45 : vector<128x1xf32> to vector<1x128x1xf32>
    %cst_15 = arith.constant dense<0.000000e+00> : vector<1xf32>
    %47 = vector.multi_reduction <add>, %46, %cst_15 [1, 2] : vector<1x128x1xf32> to vector<1xf32>
    %48 = vector.shape_cast %47 : vector<1xf32> to vector<1x1x1xf32>
    %49 = vector.extract %48[0, 0, 0] : f32 from vector<1x1x1xf32>
    %cst_16 = arith.constant -1.000000e+30 : f32
    %50 = vector.broadcast %cst_16 : f32 to vector<128x128xf32>
    %51 = arith.select %25, %15, %50 : vector<128x128xi1>, vector<128x128xf32>
    %cst_17 = arith.constant dense<0xFF800000> : vector<128xf32>
    %52 = vector.multi_reduction <maximumf>, %51, %cst_17 [1] : vector<128x128xf32> to vector<128xf32>
    %53 = vector.shape_cast %52 : vector<128xf32> to vector<128x1xf32>
    %54 = vector.broadcast %53 : vector<128x1xf32> to vector<128x128xf32>
    %55 = arith.subf %51, %54 : vector<128x128xf32>
    %56 = math.exp %55 : vector<128x128xf32>
    %cst_18 = arith.constant dense<0.000000e+00> : vector<128xf32>
    %57 = vector.multi_reduction <add>, %56, %cst_18 [1] : vector<128x128xf32> to vector<128xf32>
    %58 = vector.shape_cast %57 : vector<128xf32> to vector<128x1xf32>
    %59 = math.log %58 : vector<128x1xf32>
    %60 = arith.addf %53, %59 : vector<128x1xf32>
    %61 = arith.subf %60, %22 : vector<128x1xf32>
    %cst_19 = arith.constant 0.000000e+00 : f32
    %62 = vector.broadcast %cst_19 : f32 to vector<128x1xf32>
    %63 = arith.select %31, %61, %62 : vector<128x1xi1>, vector<128x1xf32>
    %64 = vector.shape_cast %63 : vector<128x1xf32> to vector<1x128x1xf32>
    %cst_20 = arith.constant dense<0.000000e+00> : vector<1xf32>
    %65 = vector.multi_reduction <add>, %64, %cst_20 [1, 2] : vector<1x128x1xf32> to vector<1xf32>
    %66 = vector.shape_cast %65 : vector<1xf32> to vector<1x1x1xf32>
    %67 = vector.extract %66[0, 0, 0] : f32 from vector<1x1x1xf32>
    %68 = tpu.iota {dimensions = array<i32: 0>} : vector<8x128xi32>
    %69 = tpu.iota {dimensions = array<i32: 1>} : vector<8x128xi32>
    %c0_i32 = arith.constant 0 : i32
    %70 = vector.broadcast %c0_i32 : i32 to vector<8x128xi32>
    %71 = arith.cmpi eq, %68, %70 : vector<8x128xi32>
    %c0_i32_21 = arith.constant 0 : i32
    %72 = vector.broadcast %c0_i32_21 : i32 to vector<8x128xi32>
    %73 = arith.cmpi eq, %69, %72 : vector<8x128xi32>
    %74 = arith.andi %71, %73 : vector<8x128xi1>
    %c1_i32 = arith.constant 1 : i32
    %75 = vector.broadcast %c1_i32 : i32 to vector<8x128xi32>
    %76 = arith.cmpi eq, %69, %75 : vector<8x128xi32>
    %77 = arith.andi %71, %76 : vector<8x128xi1>
    %cst_22 = arith.constant 0.000000e+00 : f32
    %78 = vector.broadcast %67 : f32 to vector<8x128xf32>
    %79 = vector.broadcast %cst_22 : f32 to vector<8x128xf32>
    %80 = arith.select %77, %78, %79 : vector<8x128xi1>, vector<8x128xf32>
    %81 = vector.broadcast %49 : f32 to vector<8x128xf32>
    %82 = arith.select %74, %81, %80 : vector<8x128xi1>, vector<8x128xf32>
    %c0_23 = arith.constant 0 : index
    %c0_24 = arith.constant 0 : index
    %c0_25 = arith.constant 0 : index
    %83 = vector.load %arg4[%c0_23, %c0_24, %c0_25] : memref<1x8x128xf32, #tpu.memory_space<vmem>>, vector<1x8x128xf32>
    %84 = vector.shape_cast %83 : vector<1x8x128xf32> to vector<8x128xf32>
    %85 = vector.shape_cast %82 : vector<8x128xf32> to vector<1x8x128xf32>
    tpu.vector_store %arg4[%c0_23, %c0_24, %c0_25], %85 {strides = array<i32>} : memref<1x8x128xf32, #tpu.memory_space<vmem>>, vector<1x8x128xf32>,
    return
  }
  func.func @transform_0(%arg0: i32) -> (i32, i32) {
    %c0_i32 = arith.constant 0 : i32
    %c0_i32_0 = arith.constant 0 : i32
    %c0_i32_1 = arith.constant 0 : i32
    return %c0_i32, %c0_i32_0 : i32, i32
  }
  func.func @transform_1(%arg0: i32) -> (i32, i32) {
    %c0_i32 = arith.constant 0 : i32
    %c0_i32_0 = arith.constant 0 : i32
    %c0_i32_1 = arith.constant 0 : i32
    return %c0_i32, %c0_i32_0 : i32, i32
  }
  func.func @transform_2(%arg0: i32) -> (i32, i32) {
    %c0_i32 = arith.constant 0 : i32
    %c0_i32_0 = arith.constant 0 : i32
    %c0_i32_1 = arith.constant 0 : i32
    return %c0_i32, %c0_i32_0 : i32, i32
  }
  func.func @transform_3(%arg0: i32) -> (i32, i32, i32) {
    %c0_i32 = arith.constant 0 : i32
    %c0_i32_0 = arith.constant 0 : i32
    %c0_i32_1 = arith.constant 0 : i32
    return %arg0, %c0_i32, %c0_i32_0 : i32, i32, i32
  }
}

</mosaic_0001>

<llo_original>
// kernel: tpu_custom_call.1
$region0: #{tpu_custom_call.1}
  #allocation0 [shape = 'u32[]', space=smem, size = 0x4, offset = 0x4, fixed_abs, tag = 'smem constant byte address 0x4 - core index']
  #allocation1 [shape = 'u32[72,128]{1,0:T(1,128)}', space=vmem, size = 0x9000, scoped, tag = 'internal scratch']
  #allocation2 [shape = 'f32[1,1]{1,0:T(1,128)S(6)}', space=smem, size = 0x200, scoped, tag = 'scoped memory for tpu_custom_call.1']
  %s0 = inlined_call_operand.<no memory space> [shape: f32[1,1], index: 0, kind: input, shape index: {}]
  %s1 = inlined_call_operand.vmem [shape: bf16[128,32], index: 1, kind: input, shape index: {}]
  %s2 = inlined_call_operand.vmem [shape: bf16[128,32], index: 2, kind: input, shape index: {}]
  %s3 = inlined_call_operand.hbm [shape: f32[1,8,128], index: 3, kind: output, shape index: {}]
  %s4 = sld [smem:[#allocation0]]
  $region22: #{tpu_custom_call.1} parent=0
    _
  %s6 = ssub.s32 1, %s4
  %s7 = scalar_select 0, %s6, %s4
  %8 = sst [smem:[#allocation2]] %s0
  $region1: #{tpu_custom_call.1} parent=0
    #allocation3 [shape = 'u8[4096]{0}', space=vmem, size = 0x1000, scoped, tag = 'output window, operand 0, single buffered']
    #allocation4 [shape = 's32[1]{0}', space=sflag, size = 0x4, scoped, tag = 'scoped memory for tpu_custom_call.1']
    %9 = vsyncpa [#allocation4], 0
    // Predicated region
    $region2: #{tpu_custom_call.1} parent=1 // pred_check
      _
    $region3: #{tpu_custom_call.1} parent=1 // pred_check_branch
      %11 = sbr.rel (0) target = $region5
    $region4: #{tpu_custom_call.1} parent=1 // pred_region
      _
    $region5: #{tpu_custom_call.1} parent=1 // pred_fallthru
      _
    // Predicated region
    $region6: #{tpu_custom_call.1} parent=1 // pred_check
      _
    $region7: #{tpu_custom_call.1} parent=1 // pred_check_branch
      %13 = sbr.rel (0) target = $region9
    $region8: #{tpu_custom_call.1} parent=1 // pred_region
      _
    $region9: #{tpu_custom_call.1} parent=1 // pred_fallthru
      _
    // Predicated region
    $region10: #{tpu_custom_call.1} parent=1 // pred_check
      _
    $region11: #{tpu_custom_call.1} parent=1 // pred_check_branch
      %15 = sbr.rel (0) target = $region13
    $region12: #{tpu_custom_call.1} parent=1 // pred_region
      _
    $region13: #{tpu_custom_call.1} parent=1 // pred_fallthru
      _
    %s16 = sld [smem:[#allocation2]]
    %s17 = smul.u32 0, 128
    %s18 = sshra.s32 %s17, 3
    %s19 = sand.u32 %s17, 7
    %s20 = smul.addr %s18, 4
    %s21 = scalar_lea.vmem %s1, %s20
    %v22 = vld [vmem:[%s21] sm:$0xf]
    %v23 = vld [vmem:[%s21 + $0x4] sm:$0xf]
    %v24 = vld [vmem:[%s21 + $0x8] sm:$0xf]
    %v25 = vld [vmem:[%s21 + $0xc] sm:$0xf]
    %v26 = vld [vmem:[%s21 + $0x10] sm:$0xf]
    %v27 = vld [vmem:[%s21 + $0x14] sm:$0xf]
    %v28 = vld [vmem:[%s21 + $0x18] sm:$0xf]
    %v29 = vld [vmem:[%s21 + $0x1c] sm:$0xf]
    %v30 = vld [vmem:[%s21 + $0x20] sm:$0xf]
    %v31 = vld [vmem:[%s21 + $0x24] sm:$0xf]
    %v32 = vld [vmem:[%s21 + $0x28] sm:$0xf]
    %v33 = vld [vmem:[%s21 + $0x2c] sm:$0xf]
    %v34 = vld [vmem:[%s21 + $0x30] sm:$0xf]
    %v35 = vld [vmem:[%s21 + $0x34] sm:$0xf]
    %v36 = vld [vmem:[%s21 + $0x38] sm:$0xf]
    %v37 = vld [vmem:[%s21 + $0x3c] sm:$0xf]
    %s38 = smul.addr %s18, 4
    %s39 = scalar_lea.vmem %s2, %s38
    %v40 = vld [vmem:[%s39] sm:$0xf]
    %v41 = vld [vmem:[%s39 + $0x4] sm:$0xf]
    %v42 = vld [vmem:[%s39 + $0x8] sm:$0xf]
    %v43 = vld [vmem:[%s39 + $0xc] sm:$0xf]
    %v44 = vld [vmem:[%s39 + $0x10] sm:$0xf]
    %v45 = vld [vmem:[%s39 + $0x14] sm:$0xf]
    %v46 = vld [vmem:[%s39 + $0x18] sm:$0xf]
    %v47 = vld [vmem:[%s39 + $0x1c] sm:$0xf]
    %v48 = vld [vmem:[%s39 + $0x20] sm:$0xf]
    %v49 = vld [vmem:[%s39 + $0x24] sm:$0xf]
    %v50 = vld [vmem:[%s39 + $0x28] sm:$0xf]
    %v51 = vld [vmem:[%s39 + $0x2c] sm:$0xf]
    %v52 = vld [vmem:[%s39 + $0x30] sm:$0xf]
    %v53 = vld [vmem:[%s39 + $0x34] sm:$0xf]
    %v54 = vld [vmem:[%s39 + $0x38] sm:$0xf]
    %v55 = vld [vmem:[%s39 + $0x3c] sm:$0xf]
    %v56 = vld [vmem:[%s2] sm:$0xf]
    %v57 = vld [vmem:[%s2 + $0x4] sm:$0xf]
    %v58 = vld [vmem:[%s2 + $0x8] sm:$0xf]
    %v59 = vld [vmem:[%s2 + $0xc] sm:$0xf]
    %v60 = vld [vmem:[%s2 + $0x10] sm:$0xf]
    %v61 = vld [vmem:[%s2 + $0x14] sm:$0xf]
    %v62 = vld [vmem:[%s2 + $0x18] sm:$0xf]
    %v63 = vld [vmem:[%s2 + $0x1c] sm:$0xf]
    %v64 = vld [vmem:[%s2 + $0x20] sm:$0xf]
    %v65 = vld [vmem:[%s2 + $0x24] sm:$0xf]
    %v66 = vld [vmem:[%s2 + $0x28] sm:$0xf]
    %v67 = vld [vmem:[%s2 + $0x2c] sm:$0xf]
    %v68 = vld [vmem:[%s2 + $0x30] sm:$0xf]
    %v69 = vld [vmem:[%s2 + $0x34] sm:$0xf]
    %v70 = vld [vmem:[%s2 + $0x38] sm:$0xf]
    %v71 = vld [vmem:[%s2 + $0x3c] sm:$0xf]
    %v88 = vunpack.c.l.b16 %v22
    %v89 = vunpack.c.l.b16 %v23
    %v90 = vunpack.c.l.b16 %v24
    %v91 = vunpack.c.l.b16 %v25
    %v92 = vunpack.c.l.b16 %v26
    %v93 = vunpack.c.l.b16 %v27
    %v94 = vunpack.c.l.b16 %v28
    %v95 = vunpack.c.l.b16 %v29
    %v96 = vunpack.c.l.b16 %v30
    %v97 = vunpack.c.l.b16 %v31
    %v98 = vunpack.c.l.b16 %v32
    %v99 = vunpack.c.l.b16 %v33
    %v100 = vunpack.c.l.b16 %v34
    %v101 = vunpack.c.l.b16 %v35
    %v102 = vunpack.c.l.b16 %v36
    %v103 = vunpack.c.l.b16 %v37
    %v104 = vpack.c.b16 %v89, %v88
    %v105 = vpack.c.b16 %v91, %v90
    %v106 = vpack.c.b16 %v93, %v92
    %v107 = vpack.c.b16 %v95, %v94
    %v108 = vpack.c.b16 %v97, %v96
    %v109 = vpack.c.b16 %v99, %v98
    %v110 = vpack.c.b16 %v101, %v100
    %v111 = vpack.c.b16 %v103, %v102
    %v128 = vunpack.c.l.b16 %v56
    %v129 = vunpack.c.l.b16 %v57
    %v130 = vunpack.c.l.b16 %v58
    %v131 = vunpack.c.l.b16 %v59
    %v132 = vunpack.c.l.b16 %v60
    %v133 = vunpack.c.l.b16 %v61
    %v134 = vunpack.c.l.b16 %v62
    %v135 = vunpack.c.l.b16 %v63
    %v136 = vunpack.c.l.b16 %v64
    %v137 = vunpack.c.l.b16 %v65
    %v138 = vunpack.c.l.b16 %v66
    %v139 = vunpack.c.l.b16 %v67
    %v140 = vunpack.c.l.b16 %v68
    %v141 = vunpack.c.l.b16 %v69
    %v142 = vunpack.c.l.b16 %v70
    %v143 = vunpack.c.l.b16 %v71
    %v144 = vpack.c.b16 %v129, %v128
    %v145 = vpack.c.b16 %v131, %v130
    %v146 = vpack.c.b16 %v133, %v132
    %v147 = vpack.c.b16 %v135, %v134
    %v148 = vpack.c.b16 %v137, %v136
    %v149 = vpack.c.b16 %v139, %v138
    %v150 = vpack.c.b16 %v141, %v140
    %v151 = vpack.c.b16 %v143, %v142
    %vm152 = vcmask 261120
    %v154 = vsel %vm152, %v104, 0
    %v157 = vsel %vm152, %v105, 0
    %v160 = vsel %vm152, %v106, 0
    %v163 = vsel %vm152, %v107, 0
    %v166 = vsel %vm152, %v108, 0
    %v169 = vsel %vm152, %v109, 0
    %v172 = vsel %vm152, %v110, 0
    %v175 = vsel %vm152, %v111, 0
    %v178 = vsel %vm152, %v144, 0
    %v181 = vsel %vm152, %v145, 0
    %v184 = vsel %vm152, %v146, 0
    %v187 = vsel %vm152, %v147, 0
    %v190 = vsel %vm152, %v148, 0
    %v193 = vsel %vm152, %v149, 0
    %v196 = vsel %vm152, %v150, 0
    %v199 = vsel %vm152, %v151, 0
    %201 = vmatpush.bf16.xpose.msra.mxu0 %v199
    %202 = vmatpush.bf16.xpose.msra.mxu0 %v196
    %203 = vmatpush.bf16.xpose.msra.mxu0 %v193
    %204 = vmatpush.bf16.xpose.msra.mxu0 %v190
    %205 = vmatpush.bf16.xpose.msra.mxu0 %v187
    %206 = vmatpush.bf16.xpose.msra.mxu0 %v184
    %207 = vmatpush.bf16.xpose.msra.mxu0 %v181
    %208 = vmatpush.bf16.xpose.msra.mxu0 %v178
    %209 = vmatmul.bf16.gmra.mxu0 %v154
    %v210 = vpop.f32.mrf.mxu0
    %v211 = vadd.f32 0.0, %v210
    %v212 = vpop.f32.mrf.mxu0
    %v213 = vadd.f32 0.0, %v212
    %214 = vmatmul.bf16.gmra.mxu0 %v157
    %v215 = vpop.f32.mrf.mxu0
    %v216 = vadd.f32 0.0, %v215
    %v217 = vpop.f32.mrf.mxu0
    %v218 = vadd.f32 0.0, %v217
    %219 = vmatmul.bf16.gmra.mxu0 %v160
    %v220 = vpop.f32.mrf.mxu0
    %v221 = vadd.f32 0.0, %v220
    %v222 = vpop.f32.mrf.mxu0
    %v223 = vadd.f32 0.0, %v222
    %224 = vmatmul.bf16.gmra.mxu0 %v163
    %v225 = vpop.f32.mrf.mxu0
    %v226 = vadd.f32 0.0, %v225
    %v227 = vpop.f32.mrf.mxu0
    %v228 = vadd.f32 0.0, %v227
    %229 = vmatmul.bf16.gmra.mxu0 %v166
    %v230 = vpop.f32.mrf.mxu0
    %v231 = vadd.f32 0.0, %v230
    %v232 = vpop.f32.mrf.mxu0
    %v233 = vadd.f32 0.0, %v232
    %234 = vmatmul.bf16.gmra.mxu0 %v169
    %v235 = vpop.f32.mrf.mxu0
    %v236 = vadd.f32 0.0, %v235
    %v237 = vpop.f32.mrf.mxu0
    %v238 = vadd.f32 0.0, %v237
    %239 = vmatmul.bf16.gmra.mxu0 %v172
    %v240 = vpop.f32.mrf.mxu0
    %v241 = vadd.f32 0.0, %v240
    %v242 = vpop.f32.mrf.mxu0
    %v243 = vadd.f32 0.0, %v242
    %244 = vmatmul.bf16.gmra.mxu0 %v175
    %v245 = vpop.f32.mrf.mxu0
    %v246 = vadd.f32 0.0, %v245
    %v247 = vpop.f32.mrf.mxu0
    %v248 = vadd.f32 0.0, %v247
    %249 = vdwg.mxu0
    %v250 = vstv %s16
    %v251 = vmul.f32 %v250, %v211
    %v252 = vmul.f32 %v250, %v213
    %v253 = vmul.f32 %v250, %v216
    %v254 = vmul.f32 %v250, %v218
    %v255 = vmul.f32 %v250, %v221
    %v256 = vmul.f32 %v250, %v223
    %v257 = vmul.f32 %v250, %v226
    %v258 = vmul.f32 %v250, %v228
    %v259 = vmul.f32 %v250, %v231
    %v260 = vmul.f32 %v250, %v233
    %v261 = vmul.f32 %v250, %v236
    %v262 = vmul.f32 %v250, %v238
    %v263 = vmul.f32 %v250, %v241
    %v264 = vmul.f32 %v250, %v243
    %v265 = vmul.f32 %v250, %v246
    %v266 = vmul.f32 %v250, %v248
    %v267 = vld [vmem:[%s1] sm:$0xf]
    %v268 = vld [vmem:[%s1 + $0x4] sm:$0xf]
    %v269 = vld [vmem:[%s1 + $0x8] sm:$0xf]
    %v270 = vld [vmem:[%s1 + $0xc] sm:$0xf]
    %v271 = vld [vmem:[%s1 + $0x10] sm:$0xf]
    %v272 = vld [vmem:[%s1 + $0x14] sm:$0xf]
    %v273 = vld [vmem:[%s1 + $0x18] sm:$0xf]
    %v274 = vld [vmem:[%s1 + $0x1c] sm:$0xf]
    %v275 = vld [vmem:[%s1 + $0x20] sm:$0xf]
    %v276 = vld [vmem:[%s1 + $0x24] sm:$0xf]
    %v277 = vld [vmem:[%s1 + $0x28] sm:$0xf]
    %v278 = vld [vmem:[%s1 + $0x2c] sm:$0xf]
    %v279 = vld [vmem:[%s1 + $0x30] sm:$0xf]
    %v280 = vld [vmem:[%s1 + $0x34] sm:$0xf]
    %v281 = vld [vmem:[%s1 + $0x38] sm:$0xf]
    %v282 = vld [vmem:[%s1 + $0x3c] sm:$0xf]
    %v299 = vunpack.c.l.b16 %v40
    %v300 = vunpack.c.l.b16 %v41
    %v301 = vunpack.c.l.b16 %v42
    %v302 = vunpack.c.l.b16 %v43
    %v303 = vunpack.c.l.b16 %v44
    %v304 = vunpack.c.l.b16 %v45
    %v305 = vunpack.c.l.b16 %v46
    %v306 = vunpack.c.l.b16 %v47
    %v307 = vunpack.c.l.b16 %v48
    %v308 = vunpack.c.l.b16 %v49
    %v309 = vunpack.c.l.b16 %v50
    %v310 = vunpack.c.l.b16 %v51
    %v311 = vunpack.c.l.b16 %v52
    %v312 = vunpack.c.l.b16 %v53
    %v313 = vunpack.c.l.b16 %v54
    %v314 = vunpack.c.l.b16 %v55
    %v315 = vpack.c.b16 %v300, %v299
    %v316 = vpack.c.b16 %v302, %v301
    %v317 = vpack.c.b16 %v304, %v303
    %v318 = vpack.c.b16 %v306, %v305
    %v319 = vpack.c.b16 %v308, %v307
    %v320 = vpack.c.b16 %v310, %v309
    %v321 = vpack.c.b16 %v312, %v311
    %v322 = vpack.c.b16 %v314, %v313
    %v339 = vunpack.c.l.b16 %v267
    %v340 = vunpack.c.l.b16 %v268
    %v341 = vunpack.c.l.b16 %v269
    %v342 = vunpack.c.l.b16 %v270
    %v343 = vunpack.c.l.b16 %v271
    %v344 = vunpack.c.l.b16 %v272
    %v345 = vunpack.c.l.b16 %v273
    %v346 = vunpack.c.l.b16 %v274
    %v347 = vunpack.c.l.b16 %v275
    %v348 = vunpack.c.l.b16 %v276
    %v349 = vunpack.c.l.b16 %v277
    %v350 = vunpack.c.l.b16 %v278
    %v351 = vunpack.c.l.b16 %v279
    %v352 = vunpack.c.l.b16 %v280
    %v353 = vunpack.c.l.b16 %v281
    %v354 = vunpack.c.l.b16 %v282
    %v355 = vpack.c.b16 %v340, %v339
    %v356 = vpack.c.b16 %v342, %v341
    %v357 = vpack.c.b16 %v344, %v343
    %v358 = vpack.c.b16 %v346, %v345
    %v359 = vpack.c.b16 %v348, %v347
    %v360 = vpack.c.b16 %v350, %v349
    %v361 = vpack.c.b16 %v352, %v351
    %v362 = vpack.c.b16 %v354, %v353
    %v364 = vsel %vm152, %v315, 0
    %v367 = vsel %vm152, %v316, 0
    %v370 = vsel %vm152, %v317, 0
    %v373 = vsel %vm152, %v318, 0
    %v376 = vsel %vm152, %v319, 0
    %v379 = vsel %vm152, %v320, 0
    %v382 = vsel %vm152, %v321, 0
    %v385 = vsel %vm152, %v322, 0
    %v388 = vsel %vm152, %v355, 0
    %v391 = vsel %vm152, %v356, 0
    %v394 = vsel %vm152, %v357, 0
    %v397 = vsel %vm152, %v358, 0
    %v400 = vsel %vm152, %v359, 0
    %v403 = vsel %vm152, %v360, 0
    %v406 = vsel %vm152, %v361, 0
    %v409 = vsel %vm152, %v362, 0
    %411 = vmatpush.bf16.xpose.msra.mxu0 %v409
    %412 = vmatpush.bf16.xpose.msra.mxu0 %v406
    %413 = vmatpush.bf16.xpose.msra.mxu0 %v403
    %414 = vmatpush.bf16.xpose.msra.mxu0 %v400
    %415 = vmatpush.bf16.xpose.msra.mxu0 %v397
    %416 = vmatpush.bf16.xpose.msra.mxu0 %v394
    %417 = vmatpush.bf16.xpose.msra.mxu0 %v391
    %418 = vmatpush.bf16.xpose.msra.mxu0 %v388
    %419 = vmatmul.bf16.gmra.mxu0 %v364
    %v420 = vpop.f32.mrf.mxu0
    %v421 = vadd.f32 0.0, %v420
    %v422 = vpop.f32.mrf.mxu0
    %v423 = vadd.f32 0.0, %v422
    %424 = vmatmul.bf16.gmra.mxu0 %v367
    %v425 = vpop.f32.mrf.mxu0
    %v426 = vadd.f32 0.0, %v425
    %v427 = vpop.f32.mrf.mxu0
    %v428 = vadd.f32 0.0, %v427
    %429 = vmatmul.bf16.gmra.mxu0 %v370
    %v430 = vpop.f32.mrf.mxu0
    %v431 = vadd.f32 0.0, %v430
    %v432 = vpop.f32.mrf.mxu0
    %v433 = vadd.f32 0.0, %v432
    %434 = vmatmul.bf16.gmra.mxu0 %v373
    %v435 = vpop.f32.mrf.mxu0
    %v436 = vadd.f32 0.0, %v435
    %v437 = vpop.f32.mrf.mxu0
    %v438 = vadd.f32 0.0, %v437
    %439 = vmatmul.bf16.gmra.mxu0 %v376
    %v440 = vpop.f32.mrf.mxu0
    %v441 = vadd.f32 0.0, %v440
    %v442 = vpop.f32.mrf.mxu0
    %v443 = vadd.f32 0.0, %v442
    %444 = vmatmul.bf16.gmra.mxu0 %v379
    %v445 = vpop.f32.mrf.mxu0
    %v446 = vadd.f32 0.0, %v445
    %v447 = vpop.f32.mrf.mxu0
    %v448 = vadd.f32 0.0, %v447
    %449 = vmatmul.bf16.gmra.mxu0 %v382
    %v450 = vpop.f32.mrf.mxu0
    %v451 = vadd.f32 0.0, %v450
    %v452 = vpop.f32.mrf.mxu0
    %v453 = vadd.f32 0.0, %v452
    %454 = vmatmul.bf16.gmra.mxu0 %v385
    %v455 = vpop.f32.mrf.mxu0
    %v456 = vadd.f32 0.0, %v455
    %v457 = vpop.f32.mrf.mxu0
    %v458 = vadd.f32 0.0, %v457
    %459 = vdwg.mxu0
    %v460 = vmul.f32 %v250, %v421
    %v461 = vmul.f32 %v250, %v423
    %v462 = vmul.f32 %v250, %v426
    %v463 = vmul.f32 %v250, %v428
    %v464 = vmul.f32 %v250, %v431
    %v465 = vmul.f32 %v250, %v433
    %v466 = vmul.f32 %v250, %v436
    %v467 = vmul.f32 %v250, %v438
    %v468 = vmul.f32 %v250, %v441
    %v469 = vmul.f32 %v250, %v443
    %v470 = vmul.f32 %v250, %v446
    %v471 = vmul.f32 %v250, %v448
    %v472 = vmul.f32 %v250, %v451
    %v473 = vmul.f32 %v250, %v453
    %v474 = vmul.f32 %v250, %v456
    %v475 = vmul.f32 %v250, %v458
    %v476 = vunpack.c.l.bf16 %v22
    %v477 = vunpack.c.l.bf16 %v23
    %v478 = vunpack.c.l.bf16 %v24
    %v479 = vunpack.c.l.bf16 %v25
    %v480 = vunpack.c.l.bf16 %v26
    %v481 = vunpack.c.l.bf16 %v27
    %v482 = vunpack.c.l.bf16 %v28
    %v483 = vunpack.c.l.bf16 %v29
    %v484 = vunpack.c.l.bf16 %v30
    %v485 = vunpack.c.l.bf16 %v31
    %v486 = vunpack.c.l.bf16 %v32
    %v487 = vunpack.c.l.bf16 %v33
    %v488 = vunpack.c.l.bf16 %v34
    %v489 = vunpack.c.l.bf16 %v35
    %v490 = vunpack.c.l.bf16 %v36
    %v491 = vunpack.c.l.bf16 %v37
    %v492 = vunpack.c.l.bf16 %v40
    %v493 = vunpack.c.l.bf16 %v41
    %v494 = vunpack.c.l.bf16 %v42
    %v495 = vunpack.c.l.bf16 %v43
    %v496 = vunpack.c.l.bf16 %v44
    %v497 = vunpack.c.l.bf16 %v45
    %v498 = vunpack.c.l.bf16 %v46
    %v499 = vunpack.c.l.bf16 %v47
    %v500 = vunpack.c.l.bf16 %v48
    %v501 = vunpack.c.l.bf16 %v49
    %v502 = vunpack.c.l.bf16 %v50
    %v503 = vunpack.c.l.bf16 %v51
    %v504 = vunpack.c.l.bf16 %v52
    %v505 = vunpack.c.l.bf16 %v53
    %v506 = vunpack.c.l.bf16 %v54
    %v507 = vunpack.c.l.bf16 %v55
    %v508 = vmul.f32 %v476, %v492
    %v509 = vmul.f32 %v477, %v493
    %v510 = vmul.f32 %v478, %v494
    %v511 = vmul.f32 %v479, %v495
    %v512 = vmul.f32 %v480, %v496
    %v513 = vmul.f32 %v481, %v497
    %v514 = vmul.f32 %v482, %v498
    %v515 = vmul.f32 %v483, %v499
    %v516 = vmul.f32 %v484, %v500
    %v517 = vmul.f32 %v485, %v501
    %v518 = vmul.f32 %v486, %v502
    %v519 = vmul.f32 %v487, %v503
    %v520 = vmul.f32 %v488, %v504
    %v521 = vmul.f32 %v489, %v505
    %v522 = vmul.f32 %v490, %v506
    %v523 = vmul.f32 %v491, %v507
    %v524 = vsel %vm152, %v508, 0.0
    %525 = vadd.xlane.f32.xlu0 %v524
    %v526 = vpop.xlane.xlu0 %525
    %v527 = vsel %vm152, %v509, 0.0
    %528 = vadd.xlane.f32.xlu0 %v527
    %v529 = vpop.xlane.xlu0 %528
    %v530 = vsel %vm152, %v510, 0.0
    %531 = vadd.xlane.f32.xlu0 %v530
    %v532 = vpop.xlane.xlu0 %531
    %v533 = vsel %vm152, %v511, 0.0
    %534 = vadd.xlane.f32.xlu0 %v533
    %v535 = vpop.xlane.xlu0 %534
    %v536 = vsel %vm152, %v512, 0.0
    %537 = vadd.xlane.f32.xlu0 %v536
    %v538 = vpop.xlane.xlu0 %537
    %v539 = vsel %vm152, %v513, 0.0
    %540 = vadd.xlane.f32.xlu0 %v539
    %v541 = vpop.xlane.xlu0 %540
    %v542 = vsel %vm152, %v514, 0.0
    %543 = vadd.xlane.f32.xlu0 %v542
    %v544 = vpop.xlane.xlu0 %543
    %v545 = vsel %vm152, %v515, 0.0
    %546 = vadd.xlane.f32.xlu0 %v545
    %v547 = vpop.xlane.xlu0 %546
    %v548 = vsel %vm152, %v516, 0.0
    %549 = vadd.xlane.f32.xlu0 %v548
    %v550 = vpop.xlane.xlu0 %549
    %v551 = vsel %vm152, %v517, 0.0
    %552 = vadd.xlane.f32.xlu0 %v551
    %v553 = vpop.xlane.xlu0 %552
    %v554 = vsel %vm152, %v518, 0.0
    %555 = vadd.xlane.f32.xlu0 %v554
    %v556 = vpop.xlane.xlu0 %555
    %v557 = vsel %vm152, %v519, 0.0
    %558 = vadd.xlane.f32.xlu0 %v557
    %v559 = vpop.xlane.xlu0 %558
    %v560 = vsel %vm152, %v520, 0.0
    %561 = vadd.xlane.f32.xlu0 %v560
    %v562 = vpop.xlane.xlu0 %561
    %v563 = vsel %vm152, %v521, 0.0
    %564 = vadd.xlane.f32.xlu0 %v563
    %v565 = vpop.xlane.xlu0 %564
    %v566 = vsel %vm152, %v522, 0.0
    %567 = vadd.xlane.f32.xlu0 %v566
    %v568 = vpop.xlane.xlu0 %567
    %v569 = vsel %vm152, %v523, 0.0
    %570 = vadd.xlane.f32.xlu0 %v569
    %v571 = vpop.xlane.xlu0 %570
    %v572 = vmul.f32 %v250, %v526
    %v573 = vmul.f32 %v250, %v529
    %v574 = vmul.f32 %v250, %v532
    %v575 = vmul.f32 %v250, %v535
    %v576 = vmul.f32 %v250, %v538
    %v577 = vmul.f32 %v250, %v541
    %v578 = vmul.f32 %v250, %v544
    %v579 = vmul.f32 %v250, %v547
    %v580 = vmul.f32 %v250, %v550
    %v581 = vmul.f32 %v250, %v553
    %v582 = vmul.f32 %v250, %v556
    %v583 = vmul.f32 %v250, %v559
    %v584 = vmul.f32 %v250, %v562
    %v585 = vmul.f32 %v250, %v565
    %v586 = vmul.f32 %v250, %v568
    %v587 = vmul.f32 %v250, %v571
    %v588 = vlaneseq
    %v589 = vand.u32 %v588, 127
    %vm590 = vcmp.lt.s32.totalorder %v589, 8
    %v591 = vlaneseq
    %v592 = vshrl.u32 %v591, 7
    %v593 = vadd.s32 %v592, 8
    %v594 = vadd.s32 %v592, 16
    %v595 = vadd.s32 %v592, 24
    %v596 = vadd.s32 %v592, 32
    %v597 = vadd.s32 %v592, 40
    %v598 = vadd.s32 %v592, 48
    %v599 = vadd.s32 %v592, 56
    %v600 = vadd.s32 %v592, 64
    %v601 = vadd.s32 %v592, 72
    %v602 = vadd.s32 %v592, 80
    %v603 = vadd.s32 %v592, 88
    %v604 = vadd.s32 %v592, 96
    %v605 = vadd.s32 %v592, 104
    %v606 = vadd.s32 %v592, 112
    %v607 = vadd.s32 %v592, 120
    %v608 = vstv %s17
    %v609 = vadd.s32 %v592, %v608
    %v610 = vadd.s32 %v593, %v608
    %v611 = vadd.s32 %v594, %v608
    %v612 = vadd.s32 %v595, %v608
    %v613 = vadd.s32 %v596, %v608
    %v614 = vadd.s32 %v597, %v608
    %v615 = vadd.s32 %v598, %v608
    %v616 = vadd.s32 %v599, %v608
    %v617 = vadd.s32 %v600, %v608
    %v618 = vadd.s32 %v601, %v608
    %v619 = vadd.s32 %v602, %v608
    %v620 = vadd.s32 %v603, %v608
    %v621 = vadd.s32 %v604, %v608
    %v622 = vadd.s32 %v605, %v608
    %v623 = vadd.s32 %v606, %v608
    %v624 = vadd.s32 %v607, %v608
    %vm625 = vcmp.lt.s32.totalorder %v609, 8
    %vm626 = vcmp.lt.s32.totalorder %v610, 8
    %vm627 = vcmp.lt.s32.totalorder %v611, 8
    %vm628 = vcmp.lt.s32.totalorder %v612, 8
    %vm629 = vcmp.lt.s32.totalorder %v613, 8
    %vm630 = vcmp.lt.s32.totalorder %v614, 8
    %vm631 = vcmp.lt.s32.totalorder %v615, 8
    %vm632 = vcmp.lt.s32.totalorder %v616, 8
    %vm633 = vcmp.lt.s32.totalorder %v617, 8
    %vm634 = vcmp.lt.s32.totalorder %v618, 8
    %vm635 = vcmp.lt.s32.totalorder %v619, 8
    %vm636 = vcmp.lt.s32.totalorder %v620, 8
    %vm637 = vcmp.lt.s32.totalorder %v621, 8
    %vm638 = vcmp.lt.s32.totalorder %v622, 8
    %vm639 = vcmp.lt.s32.totalorder %v623, 8
    %vm640 = vcmp.lt.s32.totalorder %v624, 8
    %v641 = vsel %vm590, %v251, -1e+30
    %v642 = vsel %vm590, %v252, -1e+30
    %v643 = vsel %vm590, %v253, -1e+30
    %v644 = vsel %vm590, %v254, -1e+30
    %v645 = vsel %vm590, %v255, -1e+30
    %v646 = vsel %vm590, %v256, -1e+30
    %v647 = vsel %vm590, %v257, -1e+30
    %v648 = vsel %vm590, %v258, -1e+30
    %v649 = vsel %vm590, %v259, -1e+30
    %v650 = vsel %vm590, %v260, -1e+30
    %v651 = vsel %vm590, %v261, -1e+30
    %v652 = vsel %vm590, %v262, -1e+30
    %v653 = vsel %vm590, %v263, -1e+30
    %v654 = vsel %vm590, %v264, -1e+30
    %v655 = vsel %vm590, %v265, -1e+30
    %v656 = vsel %vm590, %v266, -1e+30
    %657 = vmax.xlane.f32.xlu0 %v641
    %v658 = vpop.xlane.xlu0 %657
    %659 = vmax.xlane.f32.xlu0 %v642
    %v660 = vpop.xlane.xlu0 %659
    %661 = vmax.xlane.f32.xlu0 %v643
    %v662 = vpop.xlane.xlu0 %661
    %663 = vmax.xlane.f32.xlu0 %v644
    %v664 = vpop.xlane.xlu0 %663
    %665 = vmax.xlane.f32.xlu0 %v645
    %v666 = vpop.xlane.xlu0 %665
    %667 = vmax.xlane.f32.xlu0 %v646
    %v668 = vpop.xlane.xlu0 %667
    %669 = vmax.xlane.f32.xlu0 %v647
    %v670 = vpop.xlane.xlu0 %669
    %671 = vmax.xlane.f32.xlu0 %v648
    %v672 = vpop.xlane.xlu0 %671
    %673 = vmax.xlane.f32.xlu0 %v649
    %v674 = vpop.xlane.xlu0 %673
    %675 = vmax.xlane.f32.xlu0 %v650
    %v676 = vpop.xlane.xlu0 %675
    %677 = vmax.xlane.f32.xlu0 %v651
    %v678 = vpop.xlane.xlu0 %677
    %679 = vmax.xlane.f32.xlu0 %v652
    %v680 = vpop.xlane.xlu0 %679
    %681 = vmax.xlane.f32.xlu0 %v653
    %v682 = vpop.xlane.xlu0 %681
    %683 = vmax.xlane.f32.xlu0 %v654
    %v684 = vpop.xlane.xlu0 %683
    %685 = vmax.xlane.f32.xlu0 %v655
    %v686 = vpop.xlane.xlu0 %685
    %687 = vmax.xlane.f32.xlu0 %v656
    %v688 = vpop.xlane.xlu0 %687
    %v689 = vsub.f32 %v641, %v658
    %v690 = vsub.f32 %v642, %v660
    %v691 = vsub.f32 %v643, %v662
    %v692 = vsub.f32 %v644, %v664
    %v693 = vsub.f32 %v645, %v666
    %v694 = vsub.f32 %v646, %v668
    %v695 = vsub.f32 %v647, %v670
    %v696 = vsub.f32 %v648, %v672
    %v697 = vsub.f32 %v649, %v674
    %v698 = vsub.f32 %v650, %v676
    %v699 = vsub.f32 %v651, %v678
    %v700 = vsub.f32 %v652, %v680
    %v701 = vsub.f32 %v653, %v682
    %v702 = vsub.f32 %v654, %v684
    %v703 = vsub.f32 %v655, %v686
    %v704 = vsub.f32 %v656, %v688
    %v705 = vmul.f32 %v689, 1.442695
    %v706 = vpow.pop %v705
    %v707 = vmul.f32 %v690, 1.442695
    %v708 = vpow.pop %v707
    %v709 = vmul.f32 %v691, 1.442695
    %v710 = vpow.pop %v709
    %v711 = vmul.f32 %v692, 1.442695
    %v712 = vpow.pop %v711
    %v713 = vmul.f32 %v693, 1.442695
    %v714 = vpow.pop %v713
    %v715 = vmul.f32 %v694, 1.442695
    %v716 = vpow.pop %v715
    %v717 = vmul.f32 %v695, 1.442695
    %v718 = vpow.pop %v717
    %v719 = vmul.f32 %v696, 1.442695
    %v720 = vpow.pop %v719
    %v721 = vmul.f32 %v697, 1.442695
    %v722 = vpow.pop %v721
    %v723 = vmul.f32 %v698, 1.442695
    %v724 = vpow.pop %v723
    %v725 = vmul.f32 %v699, 1.442695
    %v726 = vpow.pop %v725
    %v727 = vmul.f32 %v700, 1.442695
    %v728 = vpow.pop %v727
    %v729 = vmul.f32 %v701, 1.442695
    %v730 = vpow.pop %v729
    %v731 = vmul.f32 %v702, 1.442695
    %v732 = vpow.pop %v731
    %v733 = vmul.f32 %v703, 1.442695
    %v734 = vpow.pop %v733
    %v735 = vmul.f32 %v704, 1.442695
    %v736 = vpow.pop %v735
    %737 = vadd.xlane.f32.xlu0 %v706
    %v738 = vpop.xlane.xlu0 %737
    %739 = vadd.xlane.f32.xlu0 %v708
    %v740 = vpop.xlane.xlu0 %739
    %741 = vadd.xlane.f32.xlu0 %v710
    %v742 = vpop.xlane.xlu0 %741
    %743 = vadd.xlane.f32.xlu0 %v712
    %v744 = vpop.xlane.xlu0 %743
    %745 = vadd.xlane.f32.xlu0 %v714
    %v746 = vpop.xlane.xlu0 %745
    %747 = vadd.xlane.f32.xlu0 %v716
    %v748 = vpop.xlane.xlu0 %747
    %749 = vadd.xlane.f32.xlu0 %v718
    %v750 = vpop.xlane.xlu0 %749
    %751 = vadd.xlane.f32.xlu0 %v720
    %v752 = vpop.xlane.xlu0 %751
    %753 = vadd.xlane.f32.xlu0 %v722
    %v754 = vpop.xlane.xlu0 %753
    %755 = vadd.xlane.f32.xlu0 %v724
    %v756 = vpop.xlane.xlu0 %755
    %757 = vadd.xlane.f32.xlu0 %v726
    %v758 = vpop.xlane.xlu0 %757
    %759 = vadd.xlane.f32.xlu0 %v728
    %v760 = vpop.xlane.xlu0 %759
    %761 = vadd.xlane.f32.xlu0 %v730
    %v762 = vpop.xlane.xlu0 %761
    %763 = vadd.xlane.f32.xlu0 %v732
    %v764 = vpop.xlane.xlu0 %763
    %765 = vadd.xlane.f32.xlu0 %v734
    %v766 = vpop.xlane.xlu0 %765
    %767 = vadd.xlane.f32.xlu0 %v736
    %v768 = vpop.xlane.xlu0 %767
    %v769 = vlog2.pop %v738
    %v770 = vmul.f32 %v769, 0.6931472
    %v771 = vlog2.pop %v740
    %v772 = vmul.f32 %v771, 0.6931472
    %v773 = vlog2.pop %v742
    %v774 = vmul.f32 %v773, 0.6931472
    %v775 = vlog2.pop %v744
    %v776 = vmul.f32 %v775, 0.6931472
    %v777 = vlog2.pop %v746
    %v778 = vmul.f32 %v777, 0.6931472
    %v779 = vlog2.pop %v748
    %v780 = vmul.f32 %v779, 0.6931472
    %v781 = vlog2.pop %v750
    %v782 = vmul.f32 %v781, 0.6931472
    %v783 = vlog2.pop %v752
    %v784 = vmul.f32 %v783, 0.6931472
    %v785 = vlog2.pop %v754
    %v786 = vmul.f32 %v785, 0.6931472
    %v787 = vlog2.pop %v756
    %v788 = vmul.f32 %v787, 0.6931472
    %v789 = vlog2.pop %v758
    %v790 = vmul.f32 %v789, 0.6931472
    %v791 = vlog2.pop %v760
    %v792 = vmul.f32 %v791, 0.6931472
    %v793 = vlog2.pop %v762
    %v794 = vmul.f32 %v793, 0.6931472
    %v795 = vlog2.pop %v764
    %v796 = vmul.f32 %v795, 0.6931472
    %v797 = vlog2.pop %v766
    %v798 = vmul.f32 %v797, 0.6931472
    %v799 = vlog2.pop %v768
    %v800 = vmul.f32 %v799, 0.6931472
    %v801 = vadd.f32 %v658, %v770
    %v802 = vadd.f32 %v660, %v772
    %v803 = vadd.f32 %v662, %v774
    %v804 = vadd.f32 %v664, %v776
    %v805 = vadd.f32 %v666, %v778
    %v806 = vadd.f32 %v668, %v780
    %v807 = vadd.f32 %v670, %v782
    %v808 = vadd.f32 %v672, %v784
    %v809 = vadd.f32 %v674, %v786
    %v810 = vadd.f32 %v676, %v788
    %v811 = vadd.f32 %v678, %v790
    %v812 = vadd.f32 %v680, %v792
    %v813 = vadd.f32 %v682, %v794
    %v814 = vadd.f32 %v684, %v796
    %v815 = vadd.f32 %v686, %v798
    %v816 = vadd.f32 %v688, %v800
    %v817 = vsub.f32 %v801, %v572
    %v818 = vsub.f32 %v802, %v573
    %v819 = vsub.f32 %v803, %v574
    %v820 = vsub.f32 %v804, %v575
    %v821 = vsub.f32 %v805, %v576
    %v822 = vsub.f32 %v806, %v577
    %v823 = vsub.f32 %v807, %v578
    %v824 = vsub.f32 %v808, %v579
    %v825 = vsub.f32 %v809, %v580
    %v826 = vsub.f32 %v810, %v581
    %v827 = vsub.f32 %v811, %v582
    %v828 = vsub.f32 %v812, %v583
    %v829 = vsub.f32 %v813, %v584
    %v830 = vsub.f32 %v814, %v585
    %v831 = vsub.f32 %v815, %v586
    %v832 = vsub.f32 %v816, %v587
    %v833 = vsel %vm625, %v817, 0.0
    %v834 = vsel %vm626, %v818, 0.0
    %v835 = vsel %vm627, %v819, 0.0
    %v836 = vsel %vm628, %v820, 0.0
    %v837 = vsel %vm629, %v821, 0.0
    %v838 = vsel %vm630, %v822, 0.0
    %v839 = vsel %vm631, %v823, 0.0
    %v840 = vsel %vm632, %v824, 0.0
    %v841 = vsel %vm633, %v825, 0.0
    %v842 = vsel %vm634, %v826, 0.0
    %v843 = vsel %vm635, %v827, 0.0
    %v844 = vsel %vm636, %v828, 0.0
    %v845 = vsel %vm637, %v829, 0.0
    %v846 = vsel %vm638, %v830, 0.0
    %v847 = vsel %vm639, %v831, 0.0
    %v848 = vsel %vm640, %v832, 0.0
    %vm849 = vcmask 7168
    %v850 = vsel %vm849, %v833, 0.0
    %v851 = vsel %vm849, %v834, 0.0
    %v852 = vadd.f32 %v850, %v851
    %v853 = vsel %vm849, %v835, 0.0
    %v854 = vadd.f32 %v852, %v853
    %v855 = vsel %vm849, %v836, 0.0
    %v856 = vadd.f32 %v854, %v855
    %v857 = vsel %vm849, %v837, 0.0
    %v858 = vadd.f32 %v856, %v857
    %v859 = vsel %vm849, %v838, 0.0
    %v860 = vadd.f32 %v858, %v859
    %v861 = vsel %vm849, %v839, 0.0
    %v862 = vadd.f32 %v860, %v861
    %v863 = vsel %vm849, %v840, 0.0
    %v864 = vadd.f32 %v862, %v863
    %v865 = vsel %vm849, %v841, 0.0
    %v866 = vadd.f32 %v864, %v865
    %v867 = vsel %vm849, %v842, 0.0
    %v868 = vadd.f32 %v866, %v867
    %v869 = vsel %vm849, %v843, 0.0
    %v870 = vadd.f32 %v868, %v869
    %v871 = vsel %vm849, %v844, 0.0
    %v872 = vadd.f32 %v870, %v871
    %v873 = vsel %vm849, %v845, 0.0
    %v874 = vadd.f32 %v872, %v873
    %v875 = vsel %vm849, %v846, 0.0
    %v876 = vadd.f32 %v874, %v875
    %v877 = vsel %vm849, %v847, 0.0
    %v878 = vadd.f32 %v876, %v877
    %v879 = vsel %vm849, %v848, 0.0
    %v880 = vadd.f32 %v878, %v879
    %881 = vadd.xlane.f32.xlu0 %v880
    %v882 = vpop.xlane.xlu0 %881
    %v883 = vrot.slane %v882, 4
    %v884 = vadd.f32 %v882, %v883
    %v885 = vrot.slane %v884, 2
    %v886 = vadd.f32 %v884, %v885
    %v887 = vrot.slane %v886, 1
    %v888 = vadd.f32 %v886, %v887
    %s889 = vtos %v888
    %v890 = vsel %vm590, %v460, -1e+30
    %v891 = vsel %vm590, %v461, -1e+30
    %v892 = vsel %vm590, %v462, -1e+30
    %v893 = vsel %vm590, %v463, -1e+30
    %v894 = vsel %vm590, %v464, -1e+30
    %v895 = vsel %vm590, %v465, -1e+30
    %v896 = vsel %vm590, %v466, -1e+30
    %v897 = vsel %vm590, %v467, -1e+30
    %v898 = vsel %vm590, %v468, -1e+30
    %v899 = vsel %vm590, %v469, -1e+30
    %v900 = vsel %vm590, %v470, -1e+30
    %v901 = vsel %vm590, %v471, -1e+30
    %v902 = vsel %vm590, %v472, -1e+30
    %v903 = vsel %vm590, %v473, -1e+30
    %v904 = vsel %vm590, %v474, -1e+30
    %v905 = vsel %vm590, %v475, -1e+30
    %906 = vmax.xlane.f32.xlu0 %v890
    %v907 = vpop.xlane.xlu0 %906
    %908 = vmax.xlane.f32.xlu0 %v891
    %v909 = vpop.xlane.xlu0 %908
    %910 = vmax.xlane.f32.xlu0 %v892
    %v911 = vpop.xlane.xlu0 %910
    %912 = vmax.xlane.f32.xlu0 %v893
    %v913 = vpop.xlane.xlu0 %912
    %914 = vmax.xlane.f32.xlu0 %v894
    %v915 = vpop.xlane.xlu0 %914
    %916 = vmax.xlane.f32.xlu0 %v895
    %v917 = vpop.xlane.xlu0 %916
    %918 = vmax.xlane.f32.xlu0 %v896
    %v919 = vpop.xlane.xlu0 %918
    %920 = vmax.xlane.f32.xlu0 %v897
    %v921 = vpop.xlane.xlu0 %920
    %922 = vmax.xlane.f32.xlu0 %v898
    %v923 = vpop.xlane.xlu0 %922
    %924 = vmax.xlane.f32.xlu0 %v899
    %v925 = vpop.xlane.xlu0 %924
    %926 = vmax.xlane.f32.xlu0 %v900
    %v927 = vpop.xlane.xlu0 %926
    %928 = vmax.xlane.f32.xlu0 %v901
    %v929 = vpop.xlane.xlu0 %928
    %930 = vmax.xlane.f32.xlu0 %v902
    %v931 = vpop.xlane.xlu0 %930
    %932 = vmax.xlane.f32.xlu0 %v903
    %v933 = vpop.xlane.xlu0 %932
    %934 = vmax.xlane.f32.xlu0 %v904
    %v935 = vpop.xlane.xlu0 %934
    %936 = vmax.xlane.f32.xlu0 %v905
    %v937 = vpop.xlane.xlu0 %936
    %v938 = vsub.f32 %v890, %v907
    %v939 = vsub.f32 %v891, %v909
    %v940 = vsub.f32 %v892, %v911
    %v941 = vsub.f32 %v893, %v913
    %v942 = vsub.f32 %v894, %v915
    %v943 = vsub.f32 %v895, %v917
    %v944 = vsub.f32 %v896, %v919
    %v945 = vsub.f32 %v897, %v921
    %v946 = vsub.f32 %v898, %v923
    %v947 = vsub.f32 %v899, %v925
    %v948 = vsub.f32 %v900, %v927
    %v949 = vsub.f32 %v901, %v929
    %v950 = vsub.f32 %v902, %v931
    %v951 = vsub.f32 %v903, %v933
    %v952 = vsub.f32 %v904, %v935
    %v953 = vsub.f32 %v905, %v937
    %v954 = vmul.f32 %v938, 1.442695
    %v955 = vpow.pop %v954
    %v956 = vmul.f32 %v939, 1.442695
    %v957 = vpow.pop %v956
    %v958 = vmul.f32 %v940, 1.442695
    %v959 = vpow.pop %v958
    %v960 = vmul.f32 %v941, 1.442695
    %v961 = vpow.pop %v960
    %v962 = vmul.f32 %v942, 1.442695
    %v963 = vpow.pop %v962
    %v964 = vmul.f32 %v943, 1.442695
    %v965 = vpow.pop %v964
    %v966 = vmul.f32 %v944, 1.442695
    %v967 = vpow.pop %v966
    %v968 = vmul.f32 %v945, 1.442695
    %v969 = vpow.pop %v968
    %v970 = vmul.f32 %v946, 1.442695
    %v971 = vpow.pop %v970
    %v972 = vmul.f32 %v947, 1.442695
    %v973 = vpow.pop %v972
    %v974 = vmul.f32 %v948, 1.442695
    %v975 = vpow.pop %v974
    %v976 = vmul.f32 %v949, 1.442695
    %v977 = vpow.pop %v976
    %v978 = vmul.f32 %v950, 1.442695
    %v979 = vpow.pop %v978
    %v980 = vmul.f32 %v951, 1.442695
    %v981 = vpow.pop %v980
    %v982 = vmul.f32 %v952, 1.442695
    %v983 = vpow.pop %v982
    %v984 = vmul.f32 %v953, 1.442695
    %v985 = vpow.pop %v984
    %986 = vadd.xlane.f32.xlu0 %v955
    %v987 = vpop.xlane.xlu0 %986
    %988 = vadd.xlane.f32.xlu0 %v957
    %v989 = vpop.xlane.xlu0 %988
    %990 = vadd.xlane.f32.xlu0 %v959
    %v991 = vpop.xlane.xlu0 %990
    %992 = vadd.xlane.f32.xlu0 %v961
    %v993 = vpop.xlane.xlu0 %992
    %994 = vadd.xlane.f32.xlu0 %v963
    %v995 = vpop.xlane.xlu0 %994
    %996 = vadd.xlane.f32.xlu0 %v965
    %v997 = vpop.xlane.xlu0 %996
    %998 = vadd.xlane.f32.xlu0 %v967
    %v999 = vpop.xlane.xlu0 %998
    %1000 = vadd.xlane.f32.xlu0 %v969
    %v1001 = vpop.xlane.xlu0 %1000
    %1002 = vadd.xlane.f32.xlu0 %v971
    %v1003 = vpop.xlane.xlu0 %1002
    %1004 = vadd.xlane.f32.xlu0 %v973
    %v1005 = vpop.xlane.xlu0 %1004
    %1006 = vadd.xlane.f32.xlu0 %v975
    %v1007 = vpop.xlane.xlu0 %1006
    %1008 = vadd.xlane.f32.xlu0 %v977
    %v1009 = vpop.xlane.xlu0 %1008
    %1010 = vadd.xlane.f32.xlu0 %v979
    %v1011 = vpop.xlane.xlu0 %1010
    %1012 = vadd.xlane.f32.xlu0 %v981
    %v1013 = vpop.xlane.xlu0 %1012
    %1014 = vadd.xlane.f32.xlu0 %v983
    %v1015 = vpop.xlane.xlu0 %1014
    %1016 = vadd.xlane.f32.xlu0 %v985
    %v1017 = vpop.xlane.xlu0 %1016
    %v1018 = vlog2.pop %v987
    %v1019 = vmul.f32 %v1018, 0.6931472
    %v1020 = vlog2.pop %v989
    %v1021 = vmul.f32 %v1020, 0.6931472
    %v1022 = vlog2.pop %v991
    %v1023 = vmul.f32 %v1022, 0.6931472
    %v1024 = vlog2.pop %v993
    %v1025 = vmul.f32 %v1024, 0.6931472
    %v1026 = vlog2.pop %v995
    %v1027 = vmul.f32 %v1026, 0.6931472
    %v1028 = vlog2.pop %v997
    %v1029 = vmul.f32 %v1028, 0.6931472
    %v1030 = vlog2.pop %v999
    %v1031 = vmul.f32 %v1030, 0.6931472
    %v1032 = vlog2.pop %v1001
    %v1033 = vmul.f32 %v1032, 0.6931472
    %v1034 = vlog2.pop %v1003
    %v1035 = vmul.f32 %v1034, 0.6931472
    %v1036 = vlog2.pop %v1005
    %v1037 = vmul.f32 %v1036, 0.6931472
    %v1038 = vlog2.pop %v1007
    %v1039 = vmul.f32 %v1038, 0.6931472
    %v1040 = vlog2.pop %v1009
    %v1041 = vmul.f32 %v1040, 0.6931472
    %v1042 = vlog2.pop %v1011
    %v1043 = vmul.f32 %v1042, 0.6931472
    %v1044 = vlog2.pop %v1013
    %v1045 = vmul.f32 %v1044, 0.6931472
    %v1046 = vlog2.pop %v1015
    %v1047 = vmul.f32 %v1046, 0.6931472
    %v1048 = vlog2.pop %v1017
    %v1049 = vmul.f32 %v1048, 0.6931472
    %v1050 = vadd.f32 %v907, %v1019
    %v1051 = vadd.f32 %v909, %v1021
    %v1052 = vadd.f32 %v911, %v1023
    %v1053 = vadd.f32 %v913, %v1025
    %v1054 = vadd.f32 %v915, %v1027
    %v1055 = vadd.f32 %v917, %v1029
    %v1056 = vadd.f32 %v919, %v1031
    %v1057 = vadd.f32 %v921, %v1033
    %v1058 = vadd.f32 %v923, %v1035
    %v1059 = vadd.f32 %v925, %v1037
    %v1060 = vadd.f32 %v927, %v1039
    %v1061 = vadd.f32 %v929, %v1041
    %v1062 = vadd.f32 %v931, %v1043
    %v1063 = vadd.f32 %v933, %v1045
    %v1064 = vadd.f32 %v935, %v1047
    %v1065 = vadd.f32 %v937, %v1049
    %v1066 = vsub.f32 %v1050, %v572
    %v1067 = vsub.f32 %v1051, %v573
    %v1068 = vsub.f32 %v1052, %v574
    %v1069 = vsub.f32 %v1053, %v575
    %v1070 = vsub.f32 %v1054, %v576
    %v1071 = vsub.f32 %v1055, %v577
    %v1072 = vsub.f32 %v1056, %v578
    %v1073 = vsub.f32 %v1057, %v579
    %v1074 = vsub.f32 %v1058, %v580
    %v1075 = vsub.f32 %v1059, %v581
    %v1076 = vsub.f32 %v1060, %v582
    %v1077 = vsub.f32 %v1061, %v583
    %v1078 = vsub.f32 %v1062, %v584
    %v1079 = vsub.f32 %v1063, %v585
    %v1080 = vsub.f32 %v1064, %v586
    %v1081 = vsub.f32 %v1065, %v587
    %v1082 = vsel %vm625, %v1066, 0.0
    %v1083 = vsel %vm626, %v1067, 0.0
    %v1084 = vsel %vm627, %v1068, 0.0
    %v1085 = vsel %vm628, %v1069, 0.0
    %v1086 = vsel %vm629, %v1070, 0.0
    %v1087 = vsel %vm630, %v1071, 0.0
    %v1088 = vsel %vm631, %v1072, 0.0
    %v1089 = vsel %vm632, %v1073, 0.0
    %v1090 = vsel %vm633, %v1074, 0.0
    %v1091 = vsel %vm634, %v1075, 0.0
    %v1092 = vsel %vm635, %v1076, 0.0
    %v1093 = vsel %vm636, %v1077, 0.0
    %v1094 = vsel %vm637, %v1078, 0.0
    %v1095 = vsel %vm638, %v1079, 0.0
    %v1096 = vsel %vm639, %v1080, 0.0
    %v1097 = vsel %vm640, %v1081, 0.0
    %v1098 = vsel %vm849, %v1082, 0.0
    %v1099 = vsel %vm849, %v1083, 0.0
    %v1100 = vadd.f32 %v1098, %v1099
    %v1101 = vsel %vm849, %v1084, 0.0
    %v1102 = vadd.f32 %v1100, %v1101
    %v1103 = vsel %vm849, %v1085, 0.0
    %v1104 = vadd.f32 %v1102, %v1103
    %v1105 = vsel %vm849, %v1086, 0.0
    %v1106 = vadd.f32 %v1104, %v1105
    %v1107 = vsel %vm849, %v1087, 0.0
    %v1108 = vadd.f32 %v1106, %v1107
    %v1109 = vsel %vm849, %v1088, 0.0
    %v1110 = vadd.f32 %v1108, %v1109
    %v1111 = vsel %vm849, %v1089, 0.0
    %v1112 = vadd.f32 %v1110, %v1111
    %v1113 = vsel %vm849, %v1090, 0.0
    %v1114 = vadd.f32 %v1112, %v1113
    %v1115 = vsel %vm849, %v1091, 0.0
    %v1116 = vadd.f32 %v1114, %v1115
    %v1117 = vsel %vm849, %v1092, 0.0
    %v1118 = vadd.f32 %v1116, %v1117
    %v1119 = vsel %vm849, %v1093, 0.0
    %v1120 = vadd.f32 %v1118, %v1119
    %v1121 = vsel %vm849, %v1094, 0.0
    %v1122 = vadd.f32 %v1120, %v1121
    %v1123 = vsel %vm849, %v1095, 0.0
    %v1124 = vadd.f32 %v1122, %v1123
    %v1125 = vsel %vm849, %v1096, 0.0
    %v1126 = vadd.f32 %v1124, %v1125
    %v1127 = vsel %vm849, %v1097, 0.0
    %v1128 = vadd.f32 %v1126, %v1127
    %1129 = vadd.xlane.f32.xlu0 %v1128
    %v1130 = vpop.xlane.xlu0 %1129
    %v1131 = vrot.slane %v1130, 4
    %v1132 = vadd.f32 %v1130, %v1131
    %v1133 = vrot.slane %v1132, 2
    %v1134 = vadd.f32 %v1132, %v1133
    %v1135 = vrot.slane %v1134, 1
    %v1136 = vadd.f32 %v1134, %v1135
    %s1137 = vtos %v1136
    %vm1138 = vcmp.eq.s32.totalorder %v592, 0
    %vm1139 = vcmp.eq.s32.totalorder %v589, 0
    %vm1140 = vmand %vm1138, %vm1139
    %vm1141 = vcmp.eq.s32.totalorder %v589, 1
    %vm1142 = vmand %vm1138, %vm1141
    %v1143 = vstv %s1137
    %v1144 = vsel %vm1142, %v1143, 0.0
    %v1145 = vstv %s889
    %v1146 = vsel %vm1140, %v1145, %v1144
    %1147 = vst [vmem:[#allocation3] sm:$0xff] %v1146
    // Predicated region
    $region14: #{tpu_custom_call.1} parent=1 // pred_check
      _
    $region15: #{tpu_custom_call.1} parent=1 // pred_check_branch
      %1149 = sbr.rel (0) target = $region17
    $region16: #{tpu_custom_call.1} parent=1 // pred_region
      %1151 = vsyncadd [#allocation4], 0
      %s1153 = sshll.u32 [#allocation3], 4
      %s1154 = int_to_ptr.vmem [resolvable:$true] %s1153
      %s1155 = sshll.u32 %s3, 4
      %s1156 = int_to_ptr.hbm [resolvable:$true] %s1155
      %1158 = dma.vmem_to_hbm [thread:$0]  %s1154, 128, %s1156, [#allocation4]
    $region17: #{tpu_custom_call.1} parent=1 // pred_fallthru
      _
    // Predicated region
    $region18: #{tpu_custom_call.1} parent=1 // pred_check
      _
    $region19: #{tpu_custom_call.1} parent=1 // pred_check_branch
      %1160 = sbr.rel (0) target = $region21
    $region20: #{tpu_custom_call.1} parent=1 // pred_region
      %1162 = dma.done [#allocation4], 128
    $region21: #{tpu_custom_call.1} parent=1 // pred_fallthru
      _
    %1163 = vsyncpa [#allocation4], 1

// kernel: tpu_custom_call.1
$region0: #{tpu_custom_call.1}
  #allocation0 [shape = 'u32[]', space=smem, size = 0x4, offset = 0x4, fixed_abs, tag = 'smem constant byte address 0x4 - core index']
  #allocation1 [shape = 'u32[72,128]{1,0:T(1,128)}', space=vmem, size = 0x9000, scoped, tag = 'internal scratch']
  #allocation2 [shape = 'f32[1,1]{1,0:T(1,128)S(1)}', space=vmem, size = 0x200, scoped, tag = 'scoped memory for tpu_custom_call.1']
  %s0 = inlined_call_operand.<no memory space> [shape: f32[1,1], index: 0, kind: input, shape index: {}]
  %s1 = inlined_call_operand.vmem [shape: bf16[128,32], index: 1, kind: input, shape index: {}]
  %s2 = inlined_call_operand.vmem [shape: bf16[128,32], index: 2, kind: input, shape index: {}]
  %s3 = inlined_call_operand.hbm [shape: f32[1,8,128], index: 3, kind: output, shape index: {}]
  %s4 = sld [smem:[#allocation0]]
  $region22: #{tpu_custom_call.1} parent=0
    _
  %s6 = ssub.s32 1, %s4
  %s7 = scalar_select 0, %s6, %s4
  %v8 = vstv %s0
  %9 = vst [vmem:[#allocation2] sm:$0x1] %v8
  $region1: #{tpu_custom_call.1} parent=0
    #allocation3 [shape = 'u8[4096]{0}', space=vmem, size = 0x1000, scoped, tag = 'output window, operand 0, single buffered']
    #allocation4 [shape = 's32[1]{0}', space=sflag, size = 0x4, scoped, tag = 'scoped memory for tpu_custom_call.1']
    %10 = vsyncpa [#allocation4], 0
    // Predicated region
    $region2: #{tpu_custom_call.1} parent=1 // pred_check
      _
    $region3: #{tpu_custom_call.1} parent=1 // pred_check_branch
      %12 = sbr.rel (0) target = $region5
    $region4: #{tpu_custom_call.1} parent=1 // pred_region
      _
    $region5: #{tpu_custom_call.1} parent=1 // pred_fallthru
      _
    // Predicated region
    $region6: #{tpu_custom_call.1} parent=1 // pred_check
      _
    $region7: #{tpu_custom_call.1} parent=1 // pred_check_branch
      %14 = sbr.rel (0) target = $region9
    $region8: #{tpu_custom_call.1} parent=1 // pred_region
      _
    $region9: #{tpu_custom_call.1} parent=1 // pred_fallthru
      _
    // Predicated region
    $region10: #{tpu_custom_call.1} parent=1 // pred_check
      _
    $region11: #{tpu_custom_call.1} parent=1 // pred_check_branch
      %16 = sbr.rel (0) target = $region13
    $region12: #{tpu_custom_call.1} parent=1 // pred_region
      _
    $region13: #{tpu_custom_call.1} parent=1 // pred_fallthru
      _
    %v17 = vld [vmem:[#allocation2] sm:$0x1]
    %s18 = vtos %v17
    %s19 = smul.u32 0, 128
    %s20 = sshra.s32 %s19, 3
    %s21 = sand.u32 %s19, 7
    %s22 = smul.addr %s20, 4
    %s23 = scalar_lea.vmem %s1, %s22
    %v24 = vld [vmem:[%s23] sm:$0xf]
    %v25 = vld [vmem:[%s23 + $0x4] sm:$0xf]
    %v26 = vld [vmem:[%s23 + $0x8] sm:$0xf]
    %v27 = vld [vmem:[%s23 + $0xc] sm:$0xf]
    %v28 = vld [vmem:[%s23 + $0x10] sm:$0xf]
    %v29 = vld [vmem:[%s23 + $0x14] sm:$0xf]
    %v30 = vld [vmem:[%s23 + $0x18] sm:$0xf]
    %v31 = vld [vmem:[%s23 + $0x1c] sm:$0xf]
    %v32 = vld [vmem:[%s23 + $0x20] sm:$0xf]
    %v33 = vld [vmem:[%s23 + $0x24] sm:$0xf]
    %v34 = vld [vmem:[%s23 + $0x28] sm:$0xf]
    %v35 = vld [vmem:[%s23 + $0x2c] sm:$0xf]
    %v36 = vld [vmem:[%s23 + $0x30] sm:$0xf]
    %v37 = vld [vmem:[%s23 + $0x34] sm:$0xf]
    %v38 = vld [vmem:[%s23 + $0x38] sm:$0xf]
    %v39 = vld [vmem:[%s23 + $0x3c] sm:$0xf]
    %s40 = smul.addr %s20, 4
    %s41 = scalar_lea.vmem %s2, %s40
    %v42 = vld [vmem:[%s41] sm:$0xf]
    %v43 = vld [vmem:[%s41 + $0x4] sm:$0xf]
    %v44 = vld [vmem:[%s41 + $0x8] sm:$0xf]
    %v45 = vld [vmem:[%s41 + $0xc] sm:$0xf]
    %v46 = vld [vmem:[%s41 + $0x10] sm:$0xf]
    %v47 = vld [vmem:[%s41 + $0x14] sm:$0xf]
    %v48 = vld [vmem:[%s41 + $0x18] sm:$0xf]
    %v49 = vld [vmem:[%s41 + $0x1c] sm:$0xf]
    %v50 = vld [vmem:[%s41 + $0x20] sm:$0xf]
    %v51 = vld [vmem:[%s41 + $0x24] sm:$0xf]
    %v52 = vld [vmem:[%s41 + $0x28] sm:$0xf]
    %v53 = vld [vmem:[%s41 + $0x2c] sm:$0xf]
    %v54 = vld [vmem:[%s41 + $0x30] sm:$0xf]
    %v55 = vld [vmem:[%s41 + $0x34] sm:$0xf]
    %v56 = vld [vmem:[%s41 + $0x38] sm:$0xf]
    %v57 = vld [vmem:[%s41 + $0x3c] sm:$0xf]
    %v58 = vld [vmem:[%s2] sm:$0xf]
    %v59 = vld [vmem:[%s2 + $0x4] sm:$0xf]
    %v60 = vld [vmem:[%s2 + $0x8] sm:$0xf]
    %v61 = vld [vmem:[%s2 + $0xc] sm:$0xf]
    %v62 = vld [vmem:[%s2 + $0x10] sm:$0xf]
    %v63 = vld [vmem:[%s2 + $0x14] sm:$0xf]
    %v64 = vld [vmem:[%s2 + $0x18] sm:$0xf]
    %v65 = vld [vmem:[%s2 + $0x1c] sm:$0xf]
    %v66 = vld [vmem:[%s2 + $0x20] sm:$0xf]
    %v67 = vld [vmem:[%s2 + $0x24] sm:$0xf]
    %v68 = vld [vmem:[%s2 + $0x28] sm:$0xf]
    %v69 = vld [vmem:[%s2 + $0x2c] sm:$0xf]
    %v70 = vld [vmem:[%s2 + $0x30] sm:$0xf]
    %v71 = vld [vmem:[%s2 + $0x34] sm:$0xf]
    %v72 = vld [vmem:[%s2 + $0x38] sm:$0xf]
    %v73 = vld [vmem:[%s2 + $0x3c] sm:$0xf]
    %v90 = vunpack.c.l.b16 %v24
    %v91 = vunpack.c.l.b16 %v25
    %v92 = vunpack.c.l.b16 %v26
    %v93 = vunpack.c.l.b16 %v27
    %v94 = vunpack.c.l.b16 %v28
    %v95 = vunpack.c.l.b16 %v29
    %v96 = vunpack.c.l.b16 %v30
    %v97 = vunpack.c.l.b16 %v31
    %v98 = vunpack.c.l.b16 %v32
    %v99 = vunpack.c.l.b16 %v33
    %v100 = vunpack.c.l.b16 %v34
    %v101 = vunpack.c.l.b16 %v35
    %v102 = vunpack.c.l.b16 %v36
    %v103 = vunpack.c.l.b16 %v37
    %v104 = vunpack.c.l.b16 %v38
    %v105 = vunpack.c.l.b16 %v39
    %v106 = vpack.c.b16 %v91, %v90
    %v107 = vpack.c.b16 %v93, %v92
    %v108 = vpack.c.b16 %v95, %v94
    %v109 = vpack.c.b16 %v97, %v96
    %v110 = vpack.c.b16 %v99, %v98
    %v111 = vpack.c.b16 %v101, %v100
    %v112 = vpack.c.b16 %v103, %v102
    %v113 = vpack.c.b16 %v105, %v104
    %v130 = vunpack.c.l.b16 %v58
    %v131 = vunpack.c.l.b16 %v59
    %v132 = vunpack.c.l.b16 %v60
    %v133 = vunpack.c.l.b16 %v61
    %v134 = vunpack.c.l.b16 %v62
    %v135 = vunpack.c.l.b16 %v63
    %v136 = vunpack.c.l.b16 %v64
    %v137 = vunpack.c.l.b16 %v65
    %v138 = vunpack.c.l.b16 %v66
    %v139 = vunpack.c.l.b16 %v67
    %v140 = vunpack.c.l.b16 %v68
    %v141 = vunpack.c.l.b16 %v69
    %v142 = vunpack.c.l.b16 %v70
    %v143 = vunpack.c.l.b16 %v71
    %v144 = vunpack.c.l.b16 %v72
    %v145 = vunpack.c.l.b16 %v73
    %v146 = vpack.c.b16 %v131, %v130
    %v147 = vpack.c.b16 %v133, %v132
    %v148 = vpack.c.b16 %v135, %v134
    %v149 = vpack.c.b16 %v137, %v136
    %v150 = vpack.c.b16 %v139, %v138
    %v151 = vpack.c.b16 %v141, %v140
    %v152 = vpack.c.b16 %v143, %v142
    %v153 = vpack.c.b16 %v145, %v144
    %vm154 = vcmask 261120
    %v156 = vsel %vm154, %v106, 0
    %v159 = vsel %vm154, %v107, 0
    %v162 = vsel %vm154, %v108, 0
    %v165 = vsel %vm154, %v109, 0
    %v168 = vsel %vm154, %v110, 0
    %v171 = vsel %vm154, %v111, 0
    %v174 = vsel %vm154, %v112, 0
    %v177 = vsel %vm154, %v113, 0
    %v180 = vsel %vm154, %v146, 0
    %v183 = vsel %vm154, %v147, 0
    %v186 = vsel %vm154, %v148, 0
    %v189 = vsel %vm154, %v149, 0
    %v192 = vsel %vm154, %v150, 0
    %v195 = vsel %vm154, %v151, 0
    %v198 = vsel %vm154, %v152, 0
    %v201 = vsel %vm154, %v153, 0
    %203 = vmatpush.bf16.xpose.msra.mxu0 %v201
    %204 = vmatpush.bf16.xpose.msra.mxu0 %v198
    %205 = vmatpush.bf16.xpose.msra.mxu0 %v195
    %206 = vmatpush.bf16.xpose.msra.mxu0 %v192
    %207 = vmatpush.bf16.xpose.msra.mxu0 %v189
    %208 = vmatpush.bf16.xpose.msra.mxu0 %v186
    %209 = vmatpush.bf16.xpose.msra.mxu0 %v183
    %210 = vmatpush.bf16.xpose.msra.mxu0 %v180
    %211 = vmatmul.bf16.gmra.mxu0 %v156
    %v212 = vpop.f32.mrf.mxu0
    %v213 = vadd.f32 0.0, %v212
    %v214 = vpop.f32.mrf.mxu0
    %v215 = vadd.f32 0.0, %v214
    %216 = vmatmul.bf16.gmra.mxu0 %v159
    %v217 = vpop.f32.mrf.mxu0
    %v218 = vadd.f32 0.0, %v217
    %v219 = vpop.f32.mrf.mxu0
    %v220 = vadd.f32 0.0, %v219
    %221 = vmatmul.bf16.gmra.mxu0 %v162
    %v222 = vpop.f32.mrf.mxu0
    %v223 = vadd.f32 0.0, %v222
    %v224 = vpop.f32.mrf.mxu0
    %v225 = vadd.f32 0.0, %v224
    %226 = vmatmul.bf16.gmra.mxu0 %v165
    %v227 = vpop.f32.mrf.mxu0
    %v228 = vadd.f32 0.0, %v227
    %v229 = vpop.f32.mrf.mxu0
    %v230 = vadd.f32 0.0, %v229
    %231 = vmatmul.bf16.gmra.mxu0 %v168
    %v232 = vpop.f32.mrf.mxu0
    %v233 = vadd.f32 0.0, %v232
    %v234 = vpop.f32.mrf.mxu0
    %v235 = vadd.f32 0.0, %v234
    %236 = vmatmul.bf16.gmra.mxu0 %v171
    %v237 = vpop.f32.mrf.mxu0
    %v238 = vadd.f32 0.0, %v237
    %v239 = vpop.f32.mrf.mxu0
    %v240 = vadd.f32 0.0, %v239
    %241 = vmatmul.bf16.gmra.mxu0 %v174
    %v242 = vpop.f32.mrf.mxu0
    %v243 = vadd.f32 0.0, %v242
    %v244 = vpop.f32.mrf.mxu0
    %v245 = vadd.f32 0.0, %v244
    %246 = vmatmul.bf16.gmra.mxu0 %v177
    %v247 = vpop.f32.mrf.mxu0
    %v248 = vadd.f32 0.0, %v247
    %v249 = vpop.f32.mrf.mxu0
    %v250 = vadd.f32 0.0, %v249
    %251 = vdwg.mxu0
    %v252 = vstv %s18
    %v253 = vmul.f32 %v252, %v213
    %v254 = vmul.f32 %v252, %v215
    %v255 = vmul.f32 %v252, %v218
    %v256 = vmul.f32 %v252, %v220
    %v257 = vmul.f32 %v252, %v223
    %v258 = vmul.f32 %v252, %v225
    %v259 = vmul.f32 %v252, %v228
    %v260 = vmul.f32 %v252, %v230
    %v261 = vmul.f32 %v252, %v233
    %v262 = vmul.f32 %v252, %v235
    %v263 = vmul.f32 %v252, %v238
    %v264 = vmul.f32 %v252, %v240
    %v265 = vmul.f32 %v252, %v243
    %v266 = vmul.f32 %v252, %v245
    %v267 = vmul.f32 %v252, %v248
    %v268 = vmul.f32 %v252, %v250
    %v269 = vld [vmem:[%s1] sm:$0xf]
    %v270 = vld [vmem:[%s1 + $0x4] sm:$0xf]
    %v271 = vld [vmem:[%s1 + $0x8] sm:$0xf]
    %v272 = vld [vmem:[%s1 + $0xc] sm:$0xf]
    %v273 = vld [vmem:[%s1 + $0x10] sm:$0xf]
    %v274 = vld [vmem:[%s1 + $0x14] sm:$0xf]
    %v275 = vld [vmem:[%s1 + $0x18] sm:$0xf]
    %v276 = vld [vmem:[%s1 + $0x1c] sm:$0xf]
    %v277 = vld [vmem:[%s1 + $0x20] sm:$0xf]
    %v278 = vld [vmem:[%s1 + $0x24] sm:$0xf]
    %v279 = vld [vmem:[%s1 + $0x28] sm:$0xf]
    %v280 = vld [vmem:[%s1 + $0x2c] sm:$0xf]
    %v281 = vld [vmem:[%s1 + $0x30] sm:$0xf]
    %v282 = vld [vmem:[%s1 + $0x34] sm:$0xf]
    %v283 = vld [vmem:[%s1 + $0x38] sm:$0xf]
    %v284 = vld [vmem:[%s1 + $0x3c] sm:$0xf]
    %v301 = vunpack.c.l.b16 %v42
    %v302 = vunpack.c.l.b16 %v43
    %v303 = vunpack.c.l.b16 %v44
    %v304 = vunpack.c.l.b16 %v45
    %v305 = vunpack.c.l.b16 %v46
    %v306 = vunpack.c.l.b16 %v47
    %v307 = vunpack.c.l.b16 %v48
    %v308 = vunpack.c.l.b16 %v49
    %v309 = vunpack.c.l.b16 %v50
    %v310 = vunpack.c.l.b16 %v51
    %v311 = vunpack.c.l.b16 %v52
    %v312 = vunpack.c.l.b16 %v53
    %v313 = vunpack.c.l.b16 %v54
    %v314 = vunpack.c.l.b16 %v55
    %v315 = vunpack.c.l.b16 %v56
    %v316 = vunpack.c.l.b16 %v57
    %v317 = vpack.c.b16 %v302, %v301
    %v318 = vpack.c.b16 %v304, %v303
    %v319 = vpack.c.b16 %v306, %v305
    %v320 = vpack.c.b16 %v308, %v307
    %v321 = vpack.c.b16 %v310, %v309
    %v322 = vpack.c.b16 %v312, %v311
    %v323 = vpack.c.b16 %v314, %v313
    %v324 = vpack.c.b16 %v316, %v315
    %v341 = vunpack.c.l.b16 %v269
    %v342 = vunpack.c.l.b16 %v270
    %v343 = vunpack.c.l.b16 %v271
    %v344 = vunpack.c.l.b16 %v272
    %v345 = vunpack.c.l.b16 %v273
    %v346 = vunpack.c.l.b16 %v274
    %v347 = vunpack.c.l.b16 %v275
    %v348 = vunpack.c.l.b16 %v276
    %v349 = vunpack.c.l.b16 %v277
    %v350 = vunpack.c.l.b16 %v278
    %v351 = vunpack.c.l.b16 %v279
    %v352 = vunpack.c.l.b16 %v280
    %v353 = vunpack.c.l.b16 %v281
    %v354 = vunpack.c.l.b16 %v282
    %v355 = vunpack.c.l.b16 %v283
    %v356 = vunpack.c.l.b16 %v284
    %v357 = vpack.c.b16 %v342, %v341
    %v358 = vpack.c.b16 %v344, %v343
    %v359 = vpack.c.b16 %v346, %v345
    %v360 = vpack.c.b16 %v348, %v347
    %v361 = vpack.c.b16 %v350, %v349
    %v362 = vpack.c.b16 %v352, %v351
    %v363 = vpack.c.b16 %v354, %v353
    %v364 = vpack.c.b16 %v356, %v355
    %v366 = vsel %vm154, %v317, 0
    %v369 = vsel %vm154, %v318, 0
    %v372 = vsel %vm154, %v319, 0
    %v375 = vsel %vm154, %v320, 0
    %v378 = vsel %vm154, %v321, 0
    %v381 = vsel %vm154, %v322, 0
    %v384 = vsel %vm154, %v323, 0
    %v387 = vsel %vm154, %v324, 0
    %v390 = vsel %vm154, %v357, 0
    %v393 = vsel %vm154, %v358, 0
    %v396 = vsel %vm154, %v359, 0
    %v399 = vsel %vm154, %v360, 0
    %v402 = vsel %vm154, %v361, 0
    %v405 = vsel %vm154, %v362, 0
    %v408 = vsel %vm154, %v363, 0
    %v411 = vsel %vm154, %v364, 0
    %413 = vmatpush.bf16.xpose.msra.mxu0 %v411
    %414 = vmatpush.bf16.xpose.msra.mxu0 %v408
    %415 = vmatpush.bf16.xpose.msra.mxu0 %v405
    %416 = vmatpush.bf16.xpose.msra.mxu0 %v402
    %417 = vmatpush.bf16.xpose.msra.mxu0 %v399
    %418 = vmatpush.bf16.xpose.msra.mxu0 %v396
    %419 = vmatpush.bf16.xpose.msra.mxu0 %v393
    %420 = vmatpush.bf16.xpose.msra.mxu0 %v390
    %421 = vmatmul.bf16.gmra.mxu0 %v366
    %v422 = vpop.f32.mrf.mxu0
    %v423 = vadd.f32 0.0, %v422
    %v424 = vpop.f32.mrf.mxu0
    %v425 = vadd.f32 0.0, %v424
    %426 = vmatmul.bf16.gmra.mxu0 %v369
    %v427 = vpop.f32.mrf.mxu0
    %v428 = vadd.f32 0.0, %v427
    %v429 = vpop.f32.mrf.mxu0
    %v430 = vadd.f32 0.0, %v429
    %431 = vmatmul.bf16.gmra.mxu0 %v372
    %v432 = vpop.f32.mrf.mxu0
    %v433 = vadd.f32 0.0, %v432
    %v434 = vpop.f32.mrf.mxu0
    %v435 = vadd.f32 0.0, %v434
    %436 = vmatmul.bf16.gmra.mxu0 %v375
    %v437 = vpop.f32.mrf.mxu0
    %v438 = vadd.f32 0.0, %v437
    %v439 = vpop.f32.mrf.mxu0
    %v440 = vadd.f32 0.0, %v439
    %441 = vmatmul.bf16.gmra.mxu0 %v378
    %v442 = vpop.f32.mrf.mxu0
    %v443 = vadd.f32 0.0, %v442
    %v444 = vpop.f32.mrf.mxu0
    %v445 = vadd.f32 0.0, %v444
    %446 = vmatmul.bf16.gmra.mxu0 %v381
    %v447 = vpop.f32.mrf.mxu0
    %v448 = vadd.f32 0.0, %v447
    %v449 = vpop.f32.mrf.mxu0
    %v450 = vadd.f32 0.0, %v449
    %451 = vmatmul.bf16.gmra.mxu0 %v384
    %v452 = vpop.f32.mrf.mxu0
    %v453 = vadd.f32 0.0, %v452
    %v454 = vpop.f32.mrf.mxu0
    %v455 = vadd.f32 0.0, %v454
    %456 = vmatmul.bf16.gmra.mxu0 %v387
    %v457 = vpop.f32.mrf.mxu0
    %v458 = vadd.f32 0.0, %v457
    %v459 = vpop.f32.mrf.mxu0
    %v460 = vadd.f32 0.0, %v459
    %461 = vdwg.mxu0
    %v462 = vmul.f32 %v252, %v423
    %v463 = vmul.f32 %v252, %v425
    %v464 = vmul.f32 %v252, %v428
    %v465 = vmul.f32 %v252, %v430
    %v466 = vmul.f32 %v252, %v433
    %v467 = vmul.f32 %v252, %v435
    %v468 = vmul.f32 %v252, %v438
    %v469 = vmul.f32 %v252, %v440
    %v470 = vmul.f32 %v252, %v443
    %v471 = vmul.f32 %v252, %v445
    %v472 = vmul.f32 %v252, %v448
    %v473 = vmul.f32 %v252, %v450
    %v474 = vmul.f32 %v252, %v453
    %v475 = vmul.f32 %v252, %v455
    %v476 = vmul.f32 %v252, %v458
    %v477 = vmul.f32 %v252, %v460
    %v478 = vunpack.c.l.bf16 %v24
    %v479 = vunpack.c.l.bf16 %v25
    %v480 = vunpack.c.l.bf16 %v26
    %v481 = vunpack.c.l.bf16 %v27
    %v482 = vunpack.c.l.bf16 %v28
    %v483 = vunpack.c.l.bf16 %v29
    %v484 = vunpack.c.l.bf16 %v30
    %v485 = vunpack.c.l.bf16 %v31
    %v486 = vunpack.c.l.bf16 %v32
    %v487 = vunpack.c.l.bf16 %v33
    %v488 = vunpack.c.l.bf16 %v34
    %v489 = vunpack.c.l.bf16 %v35
    %v490 = vunpack.c.l.bf16 %v36
    %v491 = vunpack.c.l.bf16 %v37
    %v492 = vunpack.c.l.bf16 %v38
    %v493 = vunpack.c.l.bf16 %v39
    %v494 = vunpack.c.l.bf16 %v42
    %v495 = vunpack.c.l.bf16 %v43
    %v496 = vunpack.c.l.bf16 %v44
    %v497 = vunpack.c.l.bf16 %v45
    %v498 = vunpack.c.l.bf16 %v46
    %v499 = vunpack.c.l.bf16 %v47
    %v500 = vunpack.c.l.bf16 %v48
    %v501 = vunpack.c.l.bf16 %v49
    %v502 = vunpack.c.l.bf16 %v50
    %v503 = vunpack.c.l.bf16 %v51
    %v504 = vunpack.c.l.bf16 %v52
    %v505 = vunpack.c.l.bf16 %v53
    %v506 = vunpack.c.l.bf16 %v54
    %v507 = vunpack.c.l.bf16 %v55
    %v508 = vunpack.c.l.bf16 %v56
    %v509 = vunpack.c.l.bf16 %v57
    %v510 = vmul.f32 %v478, %v494
    %v511 = vmul.f32 %v479, %v495
    %v512 = vmul.f32 %v480, %v496
    %v513 = vmul.f32 %v481, %v497
    %v514 = vmul.f32 %v482, %v498
    %v515 = vmul.f32 %v483, %v499
    %v516 = vmul.f32 %v484, %v500
    %v517 = vmul.f32 %v485, %v501
    %v518 = vmul.f32 %v486, %v502
    %v519 = vmul.f32 %v487, %v503
    %v520 = vmul.f32 %v488, %v504
    %v521 = vmul.f32 %v489, %v505
    %v522 = vmul.f32 %v490, %v506
    %v523 = vmul.f32 %v491, %v507
    %v524 = vmul.f32 %v492, %v508
    %v525 = vmul.f32 %v493, %v509
    %v526 = vsel %vm154, %v510, 0.0
    %527 = vadd.xlane.f32.xlu0 %v526
    %v528 = vpop.xlane.xlu0 %527
    %v529 = vsel %vm154, %v511, 0.0
    %530 = vadd.xlane.f32.xlu0 %v529
    %v531 = vpop.xlane.xlu0 %530
    %v532 = vsel %vm154, %v512, 0.0
    %533 = vadd.xlane.f32.xlu0 %v532
    %v534 = vpop.xlane.xlu0 %533
    %v535 = vsel %vm154, %v513, 0.0
    %536 = vadd.xlane.f32.xlu0 %v535
    %v537 = vpop.xlane.xlu0 %536
    %v538 = vsel %vm154, %v514, 0.0
    %539 = vadd.xlane.f32.xlu0 %v538
    %v540 = vpop.xlane.xlu0 %539
    %v541 = vsel %vm154, %v515, 0.0
    %542 = vadd.xlane.f32.xlu0 %v541
    %v543 = vpop.xlane.xlu0 %542
    %v544 = vsel %vm154, %v516, 0.0
    %545 = vadd.xlane.f32.xlu0 %v544
    %v546 = vpop.xlane.xlu0 %545
    %v547 = vsel %vm154, %v517, 0.0
    %548 = vadd.xlane.f32.xlu0 %v547
    %v549 = vpop.xlane.xlu0 %548
    %v550 = vsel %vm154, %v518, 0.0
    %551 = vadd.xlane.f32.xlu0 %v550
    %v552 = vpop.xlane.xlu0 %551
    %v553 = vsel %vm154, %v519, 0.0
    %554 = vadd.xlane.f32.xlu0 %v553
    %v555 = vpop.xlane.xlu0 %554
    %v556 = vsel %vm154, %v520, 0.0
    %557 = vadd.xlane.f32.xlu0 %v556
    %v558 = vpop.xlane.xlu0 %557
    %v559 = vsel %vm154, %v521, 0.0
    %560 = vadd.xlane.f32.xlu0 %v559
    %v561 = vpop.xlane.xlu0 %560
    %v562 = vsel %vm154, %v522, 0.0
    %563 = vadd.xlane.f32.xlu0 %v562
    %v564 = vpop.xlane.xlu0 %563
    %v565 = vsel %vm154, %v523, 0.0
    %566 = vadd.xlane.f32.xlu0 %v565
    %v567 = vpop.xlane.xlu0 %566
    %v568 = vsel %vm154, %v524, 0.0
    %569 = vadd.xlane.f32.xlu0 %v568
    %v570 = vpop.xlane.xlu0 %569
    %v571 = vsel %vm154, %v525, 0.0
    %572 = vadd.xlane.f32.xlu0 %v571
    %v573 = vpop.xlane.xlu0 %572
    %v574 = vmul.f32 %v252, %v528
    %v575 = vmul.f32 %v252, %v531
    %v576 = vmul.f32 %v252, %v534
    %v577 = vmul.f32 %v252, %v537
    %v578 = vmul.f32 %v252, %v540
    %v579 = vmul.f32 %v252, %v543
    %v580 = vmul.f32 %v252, %v546
    %v581 = vmul.f32 %v252, %v549
    %v582 = vmul.f32 %v252, %v552
    %v583 = vmul.f32 %v252, %v555
    %v584 = vmul.f32 %v252, %v558
    %v585 = vmul.f32 %v252, %v561
    %v586 = vmul.f32 %v252, %v564
    %v587 = vmul.f32 %v252, %v567
    %v588 = vmul.f32 %v252, %v570
    %v589 = vmul.f32 %v252, %v573
    %v590 = vlaneseq
    %v591 = vand.u32 %v590, 127
    %vm592 = vcmp.lt.s32.totalorder %v591, 8
    %v593 = vlaneseq
    %v594 = vshrl.u32 %v593, 7
    %v595 = vadd.s32 %v594, 8
    %v596 = vadd.s32 %v594, 16
    %v597 = vadd.s32 %v594, 24
    %v598 = vadd.s32 %v594, 32
    %v599 = vadd.s32 %v594, 40
    %v600 = vadd.s32 %v594, 48
    %v601 = vadd.s32 %v594, 56
    %v602 = vadd.s32 %v594, 64
    %v603 = vadd.s32 %v594, 72
    %v604 = vadd.s32 %v594, 80
    %v605 = vadd.s32 %v594, 88
    %v606 = vadd.s32 %v594, 96
    %v607 = vadd.s32 %v594, 104
    %v608 = vadd.s32 %v594, 112
    %v609 = vadd.s32 %v594, 120
    %v610 = vstv %s19
    %v611 = vadd.s32 %v594, %v610
    %v612 = vadd.s32 %v595, %v610
    %v613 = vadd.s32 %v596, %v610
    %v614 = vadd.s32 %v597, %v610
    %v615 = vadd.s32 %v598, %v610
    %v616 = vadd.s32 %v599, %v610
    %v617 = vadd.s32 %v600, %v610
    %v618 = vadd.s32 %v601, %v610
    %v619 = vadd.s32 %v602, %v610
    %v620 = vadd.s32 %v603, %v610
    %v621 = vadd.s32 %v604, %v610
    %v622 = vadd.s32 %v605, %v610
    %v623 = vadd.s32 %v606, %v610
    %v624 = vadd.s32 %v607, %v610
    %v625 = vadd.s32 %v608, %v610
    %v626 = vadd.s32 %v609, %v610
    %vm627 = vcmp.lt.s32.totalorder %v611, 8
    %vm628 = vcmp.lt.s32.totalorder %v612, 8
    %vm629 = vcmp.lt.s32.totalorder %v613, 8
    %vm630 = vcmp.lt.s32.totalorder %v614, 8
    %vm631 = vcmp.lt.s32.totalorder %v615, 8
    %vm632 = vcmp.lt.s32.totalorder %v616, 8
    %vm633 = vcmp.lt.s32.totalorder %v617, 8
    %vm634 = vcmp.lt.s32.totalorder %v618, 8
    %vm635 = vcmp.lt.s32.totalorder %v619, 8
    %vm636 = vcmp.lt.s32.totalorder %v620, 8
    %vm637 = vcmp.lt.s32.totalorder %v621, 8
    %vm638 = vcmp.lt.s32.totalorder %v622, 8
    %vm639 = vcmp.lt.s32.totalorder %v623, 8
    %vm640 = vcmp.lt.s32.totalorder %v624, 8
    %vm641 = vcmp.lt.s32.totalorder %v625, 8
    %vm642 = vcmp.lt.s32.totalorder %v626, 8
    %v643 = vsel %vm592, %v253, -1e+30
    %v644 = vsel %vm592, %v254, -1e+30
    %v645 = vsel %vm592, %v255, -1e+30
    %v646 = vsel %vm592, %v256, -1e+30
    %v647 = vsel %vm592, %v257, -1e+30
    %v648 = vsel %vm592, %v258, -1e+30
    %v649 = vsel %vm592, %v259, -1e+30
    %v650 = vsel %vm592, %v260, -1e+30
    %v651 = vsel %vm592, %v261, -1e+30
    %v652 = vsel %vm592, %v262, -1e+30
    %v653 = vsel %vm592, %v263, -1e+30
    %v654 = vsel %vm592, %v264, -1e+30
    %v655 = vsel %vm592, %v265, -1e+30
    %v656 = vsel %vm592, %v266, -1e+30
    %v657 = vsel %vm592, %v267, -1e+30
    %v658 = vsel %vm592, %v268, -1e+30
    %659 = vmax.xlane.f32.xlu0 %v643
    %v660 = vpop.xlane.xlu0 %659
    %661 = vmax.xlane.f32.xlu0 %v644
    %v662 = vpop.xlane.xlu0 %661
    %663 = vmax.xlane.f32.xlu0 %v645
    %v664 = vpop.xlane.xlu0 %663
    %665 = vmax.xlane.f32.xlu0 %v646
    %v666 = vpop.xlane.xlu0 %665
    %667 = vmax.xlane.f32.xlu0 %v647
    %v668 = vpop.xlane.xlu0 %667
    %669 = vmax.xlane.f32.xlu0 %v648
    %v670 = vpop.xlane.xlu0 %669
    %671 = vmax.xlane.f32.xlu0 %v649
    %v672 = vpop.xlane.xlu0 %671
    %673 = vmax.xlane.f32.xlu0 %v650
    %v674 = vpop.xlane.xlu0 %673
    %675 = vmax.xlane.f32.xlu0 %v651
    %v676 = vpop.xlane.xlu0 %675
    %677 = vmax.xlane.f32.xlu0 %v652
    %v678 = vpop.xlane.xlu0 %677
    %679 = vmax.xlane.f32.xlu0 %v653
    %v680 = vpop.xlane.xlu0 %679
    %681 = vmax.xlane.f32.xlu0 %v654
    %v682 = vpop.xlane.xlu0 %681
    %683 = vmax.xlane.f32.xlu0 %v655
    %v684 = vpop.xlane.xlu0 %683
    %685 = vmax.xlane.f32.xlu0 %v656
    %v686 = vpop.xlane.xlu0 %685
    %687 = vmax.xlane.f32.xlu0 %v657
    %v688 = vpop.xlane.xlu0 %687
    %689 = vmax.xlane.f32.xlu0 %v658
    %v690 = vpop.xlane.xlu0 %689
    %v691 = vsub.f32 %v643, %v660
    %v692 = vsub.f32 %v644, %v662
    %v693 = vsub.f32 %v645, %v664
    %v694 = vsub.f32 %v646, %v666
    %v695 = vsub.f32 %v647, %v668
    %v696 = vsub.f32 %v648, %v670
    %v697 = vsub.f32 %v649, %v672
    %v698 = vsub.f32 %v650, %v674
    %v699 = vsub.f32 %v651, %v676
    %v700 = vsub.f32 %v652, %v678
    %v701 = vsub.f32 %v653, %v680
    %v702 = vsub.f32 %v654, %v682
    %v703 = vsub.f32 %v655, %v684
    %v704 = vsub.f32 %v656, %v686
    %v705 = vsub.f32 %v657, %v688
    %v706 = vsub.f32 %v658, %v690
    %v707 = vmul.f32 %v691, 1.442695
    %v708 = vpow.pop %v707
    %v709 = vmul.f32 %v692, 1.442695
    %v710 = vpow.pop %v709
    %v711 = vmul.f32 %v693, 1.442695
    %v712 = vpow.pop %v711
    %v713 = vmul.f32 %v694, 1.442695
    %v714 = vpow.pop %v713
    %v715 = vmul.f32 %v695, 1.442695
    %v716 = vpow.pop %v715
    %v717 = vmul.f32 %v696, 1.442695
    %v718 = vpow.pop %v717
    %v719 = vmul.f32 %v697, 1.442695
    %v720 = vpow.pop %v719
    %v721 = vmul.f32 %v698, 1.442695
    %v722 = vpow.pop %v721
    %v723 = vmul.f32 %v699, 1.442695
    %v724 = vpow.pop %v723
    %v725 = vmul.f32 %v700, 1.442695
    %v726 = vpow.pop %v725
    %v727 = vmul.f32 %v701, 1.442695
    %v728 = vpow.pop %v727
    %v729 = vmul.f32 %v702, 1.442695
    %v730 = vpow.pop %v729
    %v731 = vmul.f32 %v703, 1.442695
    %v732 = vpow.pop %v731
    %v733 = vmul.f32 %v704, 1.442695
    %v734 = vpow.pop %v733
    %v735 = vmul.f32 %v705, 1.442695
    %v736 = vpow.pop %v735
    %v737 = vmul.f32 %v706, 1.442695
    %v738 = vpow.pop %v737
    %739 = vadd.xlane.f32.xlu0 %v708
    %v740 = vpop.xlane.xlu0 %739
    %741 = vadd.xlane.f32.xlu0 %v710
    %v742 = vpop.xlane.xlu0 %741
    %743 = vadd.xlane.f32.xlu0 %v712
    %v744 = vpop.xlane.xlu0 %743
    %745 = vadd.xlane.f32.xlu0 %v714
    %v746 = vpop.xlane.xlu0 %745
    %747 = vadd.xlane.f32.xlu0 %v716
    %v748 = vpop.xlane.xlu0 %747
    %749 = vadd.xlane.f32.xlu0 %v718
    %v750 = vpop.xlane.xlu0 %749
    %751 = vadd.xlane.f32.xlu0 %v720
    %v752 = vpop.xlane.xlu0 %751
    %753 = vadd.xlane.f32.xlu0 %v722
    %v754 = vpop.xlane.xlu0 %753
    %755 = vadd.xlane.f32.xlu0 %v724
    %v756 = vpop.xlane.xlu0 %755
    %757 = vadd.xlane.f32.xlu0 %v726
    %v758 = vpop.xlane.xlu0 %757
    %759 = vadd.xlane.f32.xlu0 %v728
    %v760 = vpop.xlane.xlu0 %759
    %761 = vadd.xlane.f32.xlu0 %v730
    %v762 = vpop.xlane.xlu0 %761
    %763 = vadd.xlane.f32.xlu0 %v732
    %v764 = vpop.xlane.xlu0 %763
    %765 = vadd.xlane.f32.xlu0 %v734
    %v766 = vpop.xlane.xlu0 %765
    %767 = vadd.xlane.f32.xlu0 %v736
    %v768 = vpop.xlane.xlu0 %767
    %769 = vadd.xlane.f32.xlu0 %v738
    %v770 = vpop.xlane.xlu0 %769
    %v771 = vlog2.pop %v740
    %v772 = vmul.f32 %v771, 0.6931472
    %v773 = vlog2.pop %v742
    %v774 = vmul.f32 %v773, 0.6931472
    %v775 = vlog2.pop %v744
    %v776 = vmul.f32 %v775, 0.6931472
    %v777 = vlog2.pop %v746
    %v778 = vmul.f32 %v777, 0.6931472
    %v779 = vlog2.pop %v748
    %v780 = vmul.f32 %v779, 0.6931472
    %v781 = vlog2.pop %v750
    %v782 = vmul.f32 %v781, 0.6931472
    %v783 = vlog2.pop %v752
    %v784 = vmul.f32 %v783, 0.6931472
    %v785 = vlog2.pop %v754
    %v786 = vmul.f32 %v785, 0.6931472
    %v787 = vlog2.pop %v756
    %v788 = vmul.f32 %v787, 0.6931472
    %v789 = vlog2.pop %v758
    %v790 = vmul.f32 %v789, 0.6931472
    %v791 = vlog2.pop %v760
    %v792 = vmul.f32 %v791, 0.6931472
    %v793 = vlog2.pop %v762
    %v794 = vmul.f32 %v793, 0.6931472
    %v795 = vlog2.pop %v764
    %v796 = vmul.f32 %v795, 0.6931472
    %v797 = vlog2.pop %v766
    %v798 = vmul.f32 %v797, 0.6931472
    %v799 = vlog2.pop %v768
    %v800 = vmul.f32 %v799, 0.6931472
    %v801 = vlog2.pop %v770
    %v802 = vmul.f32 %v801, 0.6931472
    %v803 = vadd.f32 %v660, %v772
    %v804 = vadd.f32 %v662, %v774
    %v805 = vadd.f32 %v664, %v776
    %v806 = vadd.f32 %v666, %v778
    %v807 = vadd.f32 %v668, %v780
    %v808 = vadd.f32 %v670, %v782
    %v809 = vadd.f32 %v672, %v784
    %v810 = vadd.f32 %v674, %v786
    %v811 = vadd.f32 %v676, %v788
    %v812 = vadd.f32 %v678, %v790
    %v813 = vadd.f32 %v680, %v792
    %v814 = vadd.f32 %v682, %v794
    %v815 = vadd.f32 %v684, %v796
    %v816 = vadd.f32 %v686, %v798
    %v817 = vadd.f32 %v688, %v800
    %v818 = vadd.f32 %v690, %v802
    %v819 = vsub.f32 %v803, %v574
    %v820 = vsub.f32 %v804, %v575
    %v821 = vsub.f32 %v805, %v576
    %v822 = vsub.f32 %v806, %v577
    %v823 = vsub.f32 %v807, %v578
    %v824 = vsub.f32 %v808, %v579
    %v825 = vsub.f32 %v809, %v580
    %v826 = vsub.f32 %v810, %v581
    %v827 = vsub.f32 %v811, %v582
    %v828 = vsub.f32 %v812, %v583
    %v829 = vsub.f32 %v813, %v584
    %v830 = vsub.f32 %v814, %v585
    %v831 = vsub.f32 %v815, %v586
    %v832 = vsub.f32 %v816, %v587
    %v833 = vsub.f32 %v817, %v588
    %v834 = vsub.f32 %v818, %v589
    %v835 = vsel %vm627, %v819, 0.0
    %v836 = vsel %vm628, %v820, 0.0
    %v837 = vsel %vm629, %v821, 0.0
    %v838 = vsel %vm630, %v822, 0.0
    %v839 = vsel %vm631, %v823, 0.0
    %v840 = vsel %vm632, %v824, 0.0
    %v841 = vsel %vm633, %v825, 0.0
    %v842 = vsel %vm634, %v826, 0.0
    %v843 = vsel %vm635, %v827, 0.0
    %v844 = vsel %vm636, %v828, 0.0
    %v845 = vsel %vm637, %v829, 0.0
    %v846 = vsel %vm638, %v830, 0.0
    %v847 = vsel %vm639, %v831, 0.0
    %v848 = vsel %vm640, %v832, 0.0
    %v849 = vsel %vm641, %v833, 0.0
    %v850 = vsel %vm642, %v834, 0.0
    %vm851 = vcmask 7168
    %v852 = vsel %vm851, %v835, 0.0
    %v853 = vsel %vm851, %v836, 0.0
    %v854 = vadd.f32 %v852, %v853
    %v855 = vsel %vm851, %v837, 0.0
    %v856 = vadd.f32 %v854, %v855
    %v857 = vsel %vm851, %v838, 0.0
    %v858 = vadd.f32 %v856, %v857
    %v859 = vsel %vm851, %v839, 0.0
    %v860 = vadd.f32 %v858, %v859
    %v861 = vsel %vm851, %v840, 0.0
    %v862 = vadd.f32 %v860, %v861
    %v863 = vsel %vm851, %v841, 0.0
    %v864 = vadd.f32 %v862, %v863
    %v865 = vsel %vm851, %v842, 0.0
    %v866 = vadd.f32 %v864, %v865
    %v867 = vsel %vm851, %v843, 0.0
    %v868 = vadd.f32 %v866, %v867
    %v869 = vsel %vm851, %v844, 0.0
    %v870 = vadd.f32 %v868, %v869
    %v871 = vsel %vm851, %v845, 0.0
    %v872 = vadd.f32 %v870, %v871
    %v873 = vsel %vm851, %v846, 0.0
    %v874 = vadd.f32 %v872, %v873
    %v875 = vsel %vm851, %v847, 0.0
    %v876 = vadd.f32 %v874, %v875
    %v877 = vsel %vm851, %v848, 0.0
    %v878 = vadd.f32 %v876, %v877
    %v879 = vsel %vm851, %v849, 0.0
    %v880 = vadd.f32 %v878, %v879
    %v881 = vsel %vm851, %v850, 0.0
    %v882 = vadd.f32 %v880, %v881
    %883 = vadd.xlane.f32.xlu0 %v882
    %v884 = vpop.xlane.xlu0 %883
    %v885 = vrot.slane %v884, 4
    %v886 = vadd.f32 %v884, %v885
    %v887 = vrot.slane %v886, 2
    %v888 = vadd.f32 %v886, %v887
    %v889 = vrot.slane %v888, 1
    %v890 = vadd.f32 %v888, %v889
    %s891 = vtos %v890
    %v892 = vsel %vm592, %v462, -1e+30
    %v893 = vsel %vm592, %v463, -1e+30
    %v894 = vsel %vm592, %v464, -1e+30
    %v895 = vsel %vm592, %v465, -1e+30
    %v896 = vsel %vm592, %v466, -1e+30
    %v897 = vsel %vm592, %v467, -1e+30
    %v898 = vsel %vm592, %v468, -1e+30
    %v899 = vsel %vm592, %v469, -1e+30
    %v900 = vsel %vm592, %v470, -1e+30
    %v901 = vsel %vm592, %v471, -1e+30
    %v902 = vsel %vm592, %v472, -1e+30
    %v903 = vsel %vm592, %v473, -1e+30
    %v904 = vsel %vm592, %v474, -1e+30
    %v905 = vsel %vm592, %v475, -1e+30
    %v906 = vsel %vm592, %v476, -1e+30
    %v907 = vsel %vm592, %v477, -1e+30
    %908 = vmax.xlane.f32.xlu0 %v892
    %v909 = vpop.xlane.xlu0 %908
    %910 = vmax.xlane.f32.xlu0 %v893
    %v911 = vpop.xlane.xlu0 %910
    %912 = vmax.xlane.f32.xlu0 %v894
    %v913 = vpop.xlane.xlu0 %912
    %914 = vmax.xlane.f32.xlu0 %v895
    %v915 = vpop.xlane.xlu0 %914
    %916 = vmax.xlane.f32.xlu0 %v896
    %v917 = vpop.xlane.xlu0 %916
    %918 = vmax.xlane.f32.xlu0 %v897
    %v919 = vpop.xlane.xlu0 %918
    %920 = vmax.xlane.f32.xlu0 %v898
    %v921 = vpop.xlane.xlu0 %920
    %922 = vmax.xlane.f32.xlu0 %v899
    %v923 = vpop.xlane.xlu0 %922
    %924 = vmax.xlane.f32.xlu0 %v900
    %v925 = vpop.xlane.xlu0 %924
    %926 = vmax.xlane.f32.xlu0 %v901
    %v927 = vpop.xlane.xlu0 %926
    %928 = vmax.xlane.f32.xlu0 %v902
    %v929 = vpop.xlane.xlu0 %928
    %930 = vmax.xlane.f32.xlu0 %v903
    %v931 = vpop.xlane.xlu0 %930
    %932 = vmax.xlane.f32.xlu0 %v904
    %v933 = vpop.xlane.xlu0 %932
    %934 = vmax.xlane.f32.xlu0 %v905
    %v935 = vpop.xlane.xlu0 %934
    %936 = vmax.xlane.f32.xlu0 %v906
    %v937 = vpop.xlane.xlu0 %936
    %938 = vmax.xlane.f32.xlu0 %v907
    %v939 = vpop.xlane.xlu0 %938
    %v940 = vsub.f32 %v892, %v909
    %v941 = vsub.f32 %v893, %v911
    %v942 = vsub.f32 %v894, %v913
    %v943 = vsub.f32 %v895, %v915
    %v944 = vsub.f32 %v896, %v917
    %v945 = vsub.f32 %v897, %v919
    %v946 = vsub.f32 %v898, %v921
    %v947 = vsub.f32 %v899, %v923
    %v948 = vsub.f32 %v900, %v925
    %v949 = vsub.f32 %v901, %v927
    %v950 = vsub.f32 %v902, %v929
    %v951 = vsub.f32 %v903, %v931
    %v952 = vsub.f32 %v904, %v933
    %v953 = vsub.f32 %v905, %v935
    %v954 = vsub.f32 %v906, %v937
    %v955 = vsub.f32 %v907, %v939
    %v956 = vmul.f32 %v940, 1.442695
    %v957 = vpow.pop %v956
    %v958 = vmul.f32 %v941, 1.442695
    %v959 = vpow.pop %v958
    %v960 = vmul.f32 %v942, 1.442695
    %v961 = vpow.pop %v960
    %v962 = vmul.f32 %v943, 1.442695
    %v963 = vpow.pop %v962
    %v964 = vmul.f32 %v944, 1.442695
    %v965 = vpow.pop %v964
    %v966 = vmul.f32 %v945, 1.442695
    %v967 = vpow.pop %v966
    %v968 = vmul.f32 %v946, 1.442695
    %v969 = vpow.pop %v968
    %v970 = vmul.f32 %v947, 1.442695
    %v971 = vpow.pop %v970
    %v972 = vmul.f32 %v948, 1.442695
    %v973 = vpow.pop %v972
    %v974 = vmul.f32 %v949, 1.442695
    %v975 = vpow.pop %v974
    %v976 = vmul.f32 %v950, 1.442695
    %v977 = vpow.pop %v976
    %v978 = vmul.f32 %v951, 1.442695
    %v979 = vpow.pop %v978
    %v980 = vmul.f32 %v952, 1.442695
    %v981 = vpow.pop %v980
    %v982 = vmul.f32 %v953, 1.442695
    %v983 = vpow.pop %v982
    %v984 = vmul.f32 %v954, 1.442695
    %v985 = vpow.pop %v984
    %v986 = vmul.f32 %v955, 1.442695
    %v987 = vpow.pop %v986
    %988 = vadd.xlane.f32.xlu0 %v957
    %v989 = vpop.xlane.xlu0 %988
    %990 = vadd.xlane.f32.xlu0 %v959
    %v991 = vpop.xlane.xlu0 %990
    %992 = vadd.xlane.f32.xlu0 %v961
    %v993 = vpop.xlane.xlu0 %992
    %994 = vadd.xlane.f32.xlu0 %v963
    %v995 = vpop.xlane.xlu0 %994
    %996 = vadd.xlane.f32.xlu0 %v965
    %v997 = vpop.xlane.xlu0 %996
    %998 = vadd.xlane.f32.xlu0 %v967
    %v999 = vpop.xlane.xlu0 %998
    %1000 = vadd.xlane.f32.xlu0 %v969
    %v1001 = vpop.xlane.xlu0 %1000
    %1002 = vadd.xlane.f32.xlu0 %v971
    %v1003 = vpop.xlane.xlu0 %1002
    %1004 = vadd.xlane.f32.xlu0 %v973
    %v1005 = vpop.xlane.xlu0 %1004
    %1006 = vadd.xlane.f32.xlu0 %v975
    %v1007 = vpop.xlane.xlu0 %1006
    %1008 = vadd.xlane.f32.xlu0 %v977
    %v1009 = vpop.xlane.xlu0 %1008
    %1010 = vadd.xlane.f32.xlu0 %v979
    %v1011 = vpop.xlane.xlu0 %1010
    %1012 = vadd.xlane.f32.xlu0 %v981
    %v1013 = vpop.xlane.xlu0 %1012
    %1014 = vadd.xlane.f32.xlu0 %v983
    %v1015 = vpop.xlane.xlu0 %1014
    %1016 = vadd.xlane.f32.xlu0 %v985
    %v1017 = vpop.xlane.xlu0 %1016
    %1018 = vadd.xlane.f32.xlu0 %v987
    %v1019 = vpop.xlane.xlu0 %1018
    %v1020 = vlog2.pop %v989
    %v1021 = vmul.f32 %v1020, 0.6931472
    %v1022 = vlog2.pop %v991
    %v1023 = vmul.f32 %v1022, 0.6931472
    %v1024 = vlog2.pop %v993
    %v1025 = vmul.f32 %v1024, 0.6931472
    %v1026 = vlog2.pop %v995
    %v1027 = vmul.f32 %v1026, 0.6931472
    %v1028 = vlog2.pop %v997
    %v1029 = vmul.f32 %v1028, 0.6931472
    %v1030 = vlog2.pop %v999
    %v1031 = vmul.f32 %v1030, 0.6931472
    %v1032 = vlog2.pop %v1001
    %v1033 = vmul.f32 %v1032, 0.6931472
    %v1034 = vlog2.pop %v1003
    %v1035 = vmul.f32 %v1034, 0.6931472
    %v1036 = vlog2.pop %v1005
    %v1037 = vmul.f32 %v1036, 0.6931472
    %v1038 = vlog2.pop %v1007
    %v1039 = vmul.f32 %v1038, 0.6931472
    %v1040 = vlog2.pop %v1009
    %v1041 = vmul.f32 %v1040, 0.6931472
    %v1042 = vlog2.pop %v1011
    %v1043 = vmul.f32 %v1042, 0.6931472
    %v1044 = vlog2.pop %v1013
    %v1045 = vmul.f32 %v1044, 0.6931472
    %v1046 = vlog2.pop %v1015
    %v1047 = vmul.f32 %v1046, 0.6931472
    %v1048 = vlog2.pop %v1017
    %v1049 = vmul.f32 %v1048, 0.6931472
    %v1050 = vlog2.pop %v1019
    %v1051 = vmul.f32 %v1050, 0.6931472
    %v1052 = vadd.f32 %v909, %v1021
    %v1053 = vadd.f32 %v911, %v1023
    %v1054 = vadd.f32 %v913, %v1025
    %v1055 = vadd.f32 %v915, %v1027
    %v1056 = vadd.f32 %v917, %v1029
    %v1057 = vadd.f32 %v919, %v1031
    %v1058 = vadd.f32 %v921, %v1033
    %v1059 = vadd.f32 %v923, %v1035
    %v1060 = vadd.f32 %v925, %v1037
    %v1061 = vadd.f32 %v927, %v1039
    %v1062 = vadd.f32 %v929, %v1041
    %v1063 = vadd.f32 %v931, %v1043
    %v1064 = vadd.f32 %v933, %v1045
    %v1065 = vadd.f32 %v935, %v1047
    %v1066 = vadd.f32 %v937, %v1049
    %v1067 = vadd.f32 %v939, %v1051
    %v1068 = vsub.f32 %v1052, %v574
    %v1069 = vsub.f32 %v1053, %v575
    %v1070 = vsub.f32 %v1054, %v576
    %v1071 = vsub.f32 %v1055, %v577
    %v1072 = vsub.f32 %v1056, %v578
    %v1073 = vsub.f32 %v1057, %v579
    %v1074 = vsub.f32 %v1058, %v580
    %v1075 = vsub.f32 %v1059, %v581
    %v1076 = vsub.f32 %v1060, %v582
    %v1077 = vsub.f32 %v1061, %v583
    %v1078 = vsub.f32 %v1062, %v584
    %v1079 = vsub.f32 %v1063, %v585
    %v1080 = vsub.f32 %v1064, %v586
    %v1081 = vsub.f32 %v1065, %v587
    %v1082 = vsub.f32 %v1066, %v588
    %v1083 = vsub.f32 %v1067, %v589
    %v1084 = vsel %vm627, %v1068, 0.0
    %v1085 = vsel %vm628, %v1069, 0.0
    %v1086 = vsel %vm629, %v1070, 0.0
    %v1087 = vsel %vm630, %v1071, 0.0
    %v1088 = vsel %vm631, %v1072, 0.0
    %v1089 = vsel %vm632, %v1073, 0.0
    %v1090 = vsel %vm633, %v1074, 0.0
    %v1091 = vsel %vm634, %v1075, 0.0
    %v1092 = vsel %vm635, %v1076, 0.0
    %v1093 = vsel %vm636, %v1077, 0.0
    %v1094 = vsel %vm637, %v1078, 0.0
    %v1095 = vsel %vm638, %v1079, 0.0
    %v1096 = vsel %vm639, %v1080, 0.0
    %v1097 = vsel %vm640, %v1081, 0.0
    %v1098 = vsel %vm641, %v1082, 0.0
    %v1099 = vsel %vm642, %v1083, 0.0
    %v1100 = vsel %vm851, %v1084, 0.0
    %v1101 = vsel %vm851, %v1085, 0.0
    %v1102 = vadd.f32 %v1100, %v1101
    %v1103 = vsel %vm851, %v1086, 0.0
    %v1104 = vadd.f32 %v1102, %v1103
    %v1105 = vsel %vm851, %v1087, 0.0
    %v1106 = vadd.f32 %v1104, %v1105
    %v1107 = vsel %vm851, %v1088, 0.0
    %v1108 = vadd.f32 %v1106, %v1107
    %v1109 = vsel %vm851, %v1089, 0.0
    %v1110 = vadd.f32 %v1108, %v1109
    %v1111 = vsel %vm851, %v1090, 0.0
    %v1112 = vadd.f32 %v1110, %v1111
    %v1113 = vsel %vm851, %v1091, 0.0
    %v1114 = vadd.f32 %v1112, %v1113
    %v1115 = vsel %vm851, %v1092, 0.0
    %v1116 = vadd.f32 %v1114, %v1115
    %v1117 = vsel %vm851, %v1093, 0.0
    %v1118 = vadd.f32 %v1116, %v1117
    %v1119 = vsel %vm851, %v1094, 0.0
    %v1120 = vadd.f32 %v1118, %v1119
    %v1121 = vsel %vm851, %v1095, 0.0
    %v1122 = vadd.f32 %v1120, %v1121
    %v1123 = vsel %vm851, %v1096, 0.0
    %v1124 = vadd.f32 %v1122, %v1123
    %v1125 = vsel %vm851, %v1097, 0.0
    %v1126 = vadd.f32 %v1124, %v1125
    %v1127 = vsel %vm851, %v1098, 0.0
    %v1128 = vadd.f32 %v1126, %v1127
    %v1129 = vsel %vm851, %v1099, 0.0
    %v1130 = vadd.f32 %v1128, %v1129
    %1131 = vadd.xlane.f32.xlu0 %v1130
    %v1132 = vpop.xlane.xlu0 %1131
    %v1133 = vrot.slane %v1132, 4
    %v1134 = vadd.f32 %v1132, %v1133
    %v1135 = vrot.slane %v1134, 2
    %v1136 = vadd.f32 %v1134, %v1135
    %v1137 = vrot.slane %v1136, 1
    %v1138 = vadd.f32 %v1136, %v1137
    %s1139 = vtos %v1138
    %vm1140 = vcmp.eq.s32.totalorder %v594, 0
    %vm1141 = vcmp.eq.s32.totalorder %v591, 0
    %vm1142 = vmand %vm1140, %vm1141
    %vm1143 = vcmp.eq.s32.totalorder %v591, 1
    %vm1144 = vmand %vm1140, %vm1143
    %v1145 = vstv %s1139
    %v1146 = vsel %vm1144, %v1145, 0.0
    %v1147 = vstv %s891
    %v1148 = vsel %vm1142, %v1147, %v1146
    %1149 = vst [vmem:[#allocation3] sm:$0xff] %v1148
    // Predicated region
    $region14: #{tpu_custom_call.1} parent=1 // pred_check
      _
    $region15: #{tpu_custom_call.1} parent=1 // pred_check_branch
      %1151 = sbr.rel (0) target = $region17
    $region16: #{tpu_custom_call.1} parent=1 // pred_region
      %1153 = vsyncadd [#allocation4], 0
      %s1155 = sshll.u32 [#allocation3], 4
      %s1156 = int_to_ptr.vmem [resolvable:$true] %s1155
      %s1157 = sshll.u32 %s3, 4
      %s1158 = int_to_ptr.hbm [resolvable:$true] %s1157
      %1160 = dma.vmem_to_hbm [thread:$0]  %s1156, 128, %s1158, [#allocation4]
    $region17: #{tpu_custom_call.1} parent=1 // pred_fallthru
      _
    // Predicated region
    $region18: #{tpu_custom_call.1} parent=1 // pred_check
      _
    $region19: #{tpu_custom_call.1} parent=1 // pred_check_branch
      %1162 = sbr.rel (0) target = $region21
    $region20: #{tpu_custom_call.1} parent=1 // pred_region
      %1164 = dma.done [#allocation4], 128
    $region21: #{tpu_custom_call.1} parent=1 // pred_fallthru
      _
    %1165 = vsyncpa [#allocation4], 1

</llo_original>
